<compile_context>
chip_gen: v7x
topology: tpu7x:2x2x1
jax: 0.10.0
libtpu: 0.0.40
codegen_flags: <defaults>
</compile_context>

<pallas_src>
import functools

import jax
import jax.numpy as jnp
import numpy as np
from jax.experimental import pallas as pl
from jax.experimental.pallas import tpu as pltpu

# ---- Small stand-in hyperparameters (original: SECTION=512, E=768, ...) ----
SECTION = 8
VOCAB = 50
EMBED_DIM = 32
HIDDEN_DIM = 16
OUTPUT_DIM = 3
N_LAYERS = 2
BIDIRECTIONAL = True
NUM_DIR = 2 if BIDIRECTIONAL else 1
assert NUM_DIR == 2, "fused-direction kernel assumes bidirectional=True"

T_CHUNK = 4                       # real sizes: 64-128 (budget VMEM)
assert SECTION % T_CHUNK == 0
UNROLL = min(T_CHUNK, 8)          # modest unroll; full unroll at real T spills
VMEM_LIMIT_BYTES = 32 * 1024 * 1024


# --------------------------- Pallas kernel ----------------------------------
def _gru_layer_kernel(gi_f_ref, gi_b_ref, whh_ref, bhhn_ref, *rest, emit_y):
    """One bidirectional GRU layer, both directions fused, one time chunk.

    grid = (T // T_CHUNK,), sequential ("arbitrary") because the hidden state
    is carried across chunks in a persistent VMEM scratch.

    gi_f_ref : [T_CHUNK, BB, 3H]  forward-direction input projection chunk t
    gi_b_ref : [T_CHUNK, BB, 3H]  backward-direction chunk nT-1-t (via index_map)
    whh_ref  : [2H, 6H]  block-diag(Whh_fwd, Whh_bwd)    (resident)
    bhhn_ref : [1, 2H]   n-gate recurrent biases [fwd | bwd]
    rest     : (y_f_ref, y_b_ref, hN_ref, h_scratch) if emit_y
               else (hN_ref, h_scratch)
    """
    if emit_y:
        y_f_ref, y_b_ref, hN_ref, h_sc = rest
    else:
        hN_ref, h_sc = rest
        y_f_ref = y_b_ref = None

    t = pl.program_id(0)
    nT = pl.num_programs(0)
    TC, _, threeH = gi_f_ref.shape
    H = threeH // 3

    @pl.when(t == 0)
    def _():
        h_sc[...] = jnp.zeros_like(h_sc)            # fresh hidden per layer

    whh = whh_ref[...]                              # [2H, 6H]
    bhh_n = bhhn_ref[...]                           # [1, 2H]

    def step(i, carry):
        h_f, h_b = carry
        j = TC - 1 - i                              # backward local index
        h_cat = jnp.concatenate([h_f, h_b], axis=-1)          # [BB, 2H]
        # Single MXU dot covers both directions (block-diagonal Whh).
        gh = jnp.dot(h_cat, whh, preferred_element_type=jnp.float32)  # [BB,6H]
        gf = gi_f_ref[i]                            # [BB, 3H]
        gb = gi_b_ref[j]                            # [BB, 3H]
        # PyTorch gate order r, z, n.  bhh_r/bhh_z are pre-folded into gi;
        # only the n-gate recurrent bias is applied here (under r*).
        r_f = jax.nn.sigmoid(gf[:, :H] + gh[:, :H])
        z_f = jax.nn.sigmoid(gf[:, H:2 * H] + gh[:, H:2 * H])
        n_f = jnp.tanh(gf[:, 2 * H:] + r_f * (gh[:, 2 * H:3 * H] + bhh_n[:, :H]))
        h_f_new = (1.0 - z_f) * n_f + z_f * h_f

        r_b = jax.nn.sigmoid(gb[:, :H] + gh[:, 3 * H:4 * H])
        z_b = jax.nn.sigmoid(gb[:, H:2 * H] + gh[:, 4 * H:5 * H])
        n_b = jnp.tanh(gb[:, 2 * H:] + r_b * (gh[:, 5 * H:] + bhh_n[:, H:]))
        h_b_new = (1.0 - z_b) * n_b + z_b * h_b

        if y_f_ref is not None:
            y_f_ref[i] = h_f_new                    # original time order
            y_b_ref[j] = h_b_new                    # reversed block handles order
        return (h_f_new, h_b_new)

    h_all = h_sc[...]
    hf, hb = jax.lax.fori_loop(0, TC, step, (h_all[:, :H], h_all[:, H:]),
                               unroll=UNROLL)
    h_sc[...] = jnp.concatenate([hf, hb], axis=-1)  # carry to next chunk

    @pl.when(t == nT - 1)
    def _():
        hN_ref[0] = hf                              # final fwd hidden (t = T-1)
        hN_ref[1] = hb                              # final bwd hidden (t = 0)


def gru_layer(gi_f, gi_b, whh_blk, bhh_n, *, emit_y):
    """gi_f/gi_b: [T, BB, 3H] (bias-folded input projections per direction),
    whh_blk: [2H, 6H] block-diag, bhh_n: [1, 2H].
    Returns (y_f, y_b, hN) with y_* = None for the last layer."""
    T, BB, threeH = gi_f.shape
    H = threeH // 3
    nT = T // T_CHUNK

    hN_shape = jax.ShapeDtypeStruct((2, BB, H), jnp.float32)
    hN_spec = pl.BlockSpec((2, BB, H), lambda t: (0, 0, 0))
    if emit_y:
        out_shape = (jax.ShapeDtypeStruct((T, BB, H), jnp.float32),
                     jax.ShapeDtypeStruct((T, BB, H), jnp.float32),
                     hN_shape)
        out_specs = (pl.BlockSpec((T_CHUNK, BB, H), lambda t: (t, 0, 0)),
                     pl.BlockSpec((T_CHUNK, BB, H), lambda t: (nT - 1 - t, 0, 0)),
                     hN_spec)
    else:
        out_shape = hN_shape
        out_specs = hN_spec

    res = pl.pallas_call(
        functools.partial(_gru_layer_kernel, emit_y=emit_y),
        out_shape=out_shape,
        grid_spec=pltpu.PrefetchScalarGridSpec(
            num_scalar_prefetch=0,
            grid=(nT,),
            in_specs=[
                # forward direction: chunk t
                pl.BlockSpec((T_CHUNK, BB, threeH), lambda t: (t, 0, 0)),
                # backward direction: reversed chunk order -> no HBM reversal
                pl.BlockSpec((T_CHUNK, BB, threeH), lambda t: (nT - 1 - t, 0, 0)),
                pl.BlockSpec((2 * H, 6 * H), lambda t: (0, 0)),
                pl.BlockSpec((1, 2 * H), lambda t: (0, 0)),
            ],
            out_specs=out_specs,
            scratch_shapes=[pltpu.VMEM((BB, 2 * H), jnp.float32)]),
        compiler_params=pltpu.CompilerParams(
            # Time chunks carry the hidden state -> sequential.
            dimension_semantics=("arbitrary",),
            vmem_limit_bytes=VMEM_LIMIT_BYTES),
    )(gi_f, gi_b, whh_blk, bhh_n)

    if emit_y:
        return res
    return None, None, res


# --------------------------- Model glue (plain JAX) -------------------------
def bert_embed(params, tokens):
    # TODO(synk): frozen BERT encoder replaced by frozen embedding lookup.
    return params["embed"][tokens]                      # [BB, T, E]


def gru_forward(x_bte, params):
    """Multi-layer bidirectional GRU, batch_first input.
    Returns the final hidden stack [N_LAYERS*NUM_DIR, BB, H]."""
    x = jnp.transpose(x_bte, (1, 0, 2))                 # time-major [T, BB, E]
    H = HIDDEN_DIM
    hiddens = []
    y_f = y_b = None
    for layer in range(N_LAYERS):
        wih_s, whh_s, bih_s, bhh_s = params["gru"][layer]
        # Fold bhh_r, bhh_z into the gi bias; only the n-gate bhh goes into
        # the kernel (it must be applied before the r* product).
        b_gi = bih_s + bhh_s.at[:, :, 2 * H:].set(0.0)   # [D, 1, 3H]

        # Hoisted input projection: one batched MXU matmul over the whole
        # (section-folded) sequence, off the sequential critical path.
        if layer == 0:
            gi = jnp.einsum("tbe,def->dtbf", x, wih_s,
                            preferred_element_type=jnp.float32)
        else:
            # Inter-layer "concat(fwd, bwd)" folded into the projection:
            # split W_ih along its input axis -> no [T,BB,2H] concat tensor.
            gi = (jnp.einsum("tbh,dhf->dtbf", y_f, wih_s[:, :H, :],
                             preferred_element_type=jnp.float32)
                  + jnp.einsum("tbh,dhf->dtbf", y_b, wih_s[:, H:, :],
                               preferred_element_type=jnp.float32))
        gi = gi + b_gi[:, None]                          # [D, T, BB, 3H]
        gi_f, gi_b = gi[0], gi[1]

        # Block-diagonal Whh so one [BB,2H]@[2H,6H] dot covers both dirs.
        whh_blk = jnp.zeros((2 * H, 6 * H), jnp.float32)
        whh_blk = whh_blk.at[:H, :3 * H].set(whh_s[0]).at[H:, 3 * H:].set(whh_s[1])
        bhh_n = jnp.concatenate([bhh_s[0][:, 2 * H:], bhh_s[1][:, 2 * H:]],
                                axis=-1)                 # [1, 2H]

        last = layer == N_LAYERS - 1
        y_f, y_b, hN = gru_layer(gi_f, gi_b, whh_blk, bhh_n, emit_y=not last)
        hiddens.append(hN)                               # [2, BB, H] (fwd, bwd)
        # inter-layer GRU dropout: identity in eval mode
    return jnp.concatenate(hiddens, axis=0)              # [L*D, BB, H]


def bert_gru_sentiment(params, text):
    B, S_total = text.shape
    ns = S_total // SECTION
    # Sections are independent (fresh zero hidden each) -> fold the section
    # loop into the batch dimension: one embed + one GRU pass for all of it.
    tokens = text[:, :ns * SECTION].reshape(B * ns, SECTION)
    embedded = bert_embed(params, tokens)                # [B*ns, SECTION, E]
    hidden = gru_forward(embedded, params)               # [L*D, B*ns, H]
    # sum over sections / num_sections == mean over the section axis
    hidden = hidden.reshape(N_LAYERS * NUM_DIR, B, ns, HIDDEN_DIM).mean(axis=2)
    h = jnp.concatenate([hidden[-2], hidden[-1]], axis=1)
    # self.dropout: identity in eval mode; the head is tiny -> leave to XLA.
    return h @ params["out_w"] + params["out_b"][None, :]


# --------------------------- Parameter init ---------------------------------
def init_params(key):
    keys = iter(jax.random.split(key, 64))
    params = {"gru": {}}
    params["embed"] = jax.random.normal(next(keys), (VOCAB, EMBED_DIM),
                                        jnp.float32) * 0.1
    k = 1.0 / np.sqrt(HIDDEN_DIM)
    for layer in range(N_LAYERS):
        in_dim = EMBED_DIM if layer == 0 else HIDDEN_DIM * NUM_DIR
        wih_s = jax.random.uniform(next(keys), (NUM_DIR, in_dim, 3 * HIDDEN_DIM),
                                   jnp.float32, -k, k)
        whh_s = jax.random.uniform(next(keys), (NUM_DIR, HIDDEN_DIM, 3 * HIDDEN_DIM),
                                   jnp.float32, -k, k)
        bih_s = jax.random.uniform(next(keys), (NUM_DIR, 1, 3 * HIDDEN_DIM),
                                   jnp.float32, -k, k)
        bhh_s = jax.random.uniform(next(keys), (NUM_DIR, 1, 3 * HIDDEN_DIM),
                                   jnp.float32, -k, k)
        params["gru"][layer] = (wih_s, whh_s, bih_s, bhh_s)
    in_f = HIDDEN_DIM * NUM_DIR
    ko = 1.0 / np.sqrt(in_f)
    params["out_w"] = jax.random.uniform(next(keys), (in_f, OUTPUT_DIM),
                                         jnp.float32, -ko, ko)
    params["out_b"] = jax.random.uniform(next(keys), (OUTPUT_DIM,),
                                         jnp.float32, -ko, ko)
    return params


# --------------------------- Pure-JAX reference -----------------------------
def _gru_cell_ref(x, h, wih, whh, bih, bhh):
    gi = x @ wih + bih
    gh = h @ whh + bhh
    H = h.shape[-1]
    r = jax.nn.sigmoid(gi[:, :H] + gh[:, :H])
    z = jax.nn.sigmoid(gi[:, H:2 * H] + gh[:, H:2 * H])
    n = jnp.tanh(gi[:, 2 * H:] + r * gh[:, 2 * H:])
    return (1.0 - z) * n + z * h


def _gru_forward_ref(x_bte, params):
    x = jnp.transpose(x_bte, (1, 0, 2))
    T, B, _ = x.shape
    hiddens = []
    inp = x
    for layer in range(N_LAYERS):
        wih_s, whh_s, bih_s, bhh_s = params["gru"][layer]
        outs = []
        for d in range(NUM_DIR):
            wih, whh, bih, bhh = wih_s[d], whh_s[d], bih_s[d], bhh_s[d]
            seq = inp if d == 0 else inp[::-1]
            h = jnp.zeros((B, HIDDEN_DIM), jnp.float32)
            ys = []
            for t in range(T):
                h = _gru_cell_ref(seq[t], h, wih, whh, bih, bhh)
                ys.append(h)
            y = jnp.stack(ys, axis=0)
            if d == 1:
                y = y[::-1]
            outs.append(y)
            hiddens.append(h)
        inp = jnp.concatenate(outs, axis=-1)
    return jnp.stack(hiddens, axis=0)


def _forward_ref(params, text):
    """Per-section loop, matching the PyTorch control flow literally."""
    num_sections = text.shape[1] // SECTION
    hidden_all = None
    for i in range(num_sections):
        emb = bert_embed(params, text[:, SECTION * i:SECTION * (i + 1)])
        hidden = _gru_forward_ref(emb, params)
        hidden_all = hidden if hidden_all is None else hidden_all + hidden
    hidden_all = hidden_all / num_sections
    h = jnp.concatenate([hidden_all[-2], hidden_all[-1]], axis=1)
    return h @ params["out_w"] + params["out_b"][None, :]


# --------------------------- Main --------------------------------------------
if __name__ == "__main__":
    key = jax.random.PRNGKey(0)
    pkey, tkey = jax.random.split(key)
    params = init_params(pkey)

    B = 2
    NUM_SECTIONS = 2
    text = jax.random.randint(tkey, (B, SECTION * NUM_SECTIONS), 0, VOCAB,
                              dtype=jnp.int32)

    fwd = jax.jit(bert_gru_sentiment)
    out = jax.block_until_ready(fwd(params, text))      # [B, OUTPUT_DIM]

    ref = _forward_ref(params, text)
    if not np.allclose(np.asarray(out), np.asarray(ref), atol=1e-3, rtol=1e-3):
        raise AssertionError("Pallas output mismatch vs pure-JAX reference")

    print("KERNEL_OK")
</pallas_src>

<mosaic_0001>
module attributes {stable_mosaic.version = 11 : i64} {
  func.func @_gru_layer_kernel(%arg0: i32, %arg1: memref<4x4x48xf32, #tpu.memory_space<vmem>>, %arg2: memref<4x4x48xf32, #tpu.memory_space<vmem>>, %arg3: memref<32x96xf32, #tpu.memory_space<vmem>>, %arg4: memref<1x32xf32, #tpu.memory_space<vmem>>, %arg5: memref<4x4x16xf32, #tpu.memory_space<vmem>>, %arg6: memref<4x4x16xf32, #tpu.memory_space<vmem>>, %arg7: memref<2x4x16xf32, #tpu.memory_space<vmem>>, %arg8: memref<4x32xf32, #tpu.memory_space<vmem>>) attributes {dimension_semantics = [#tpu.dimension_semantics<arbitrary>], iteration_bounds = array<i64: 2>, scalar_prefetch = 0 : i64, scratch_operands = 1 : i64, tpu.core_type = #tpu.core_type<tc>, window_params = [{transform_indices = @transform_0, window_bounds = array<i64: 4, 4, 48>}, {transform_indices = @transform_1, window_bounds = array<i64: 4, 4, 48>}, {pipeline_mode = #tpu.pipeline_mode<synchronous>, transform_indices = @transform_2, window_bounds = array<i64: 32, 96>}, {pipeline_mode = #tpu.pipeline_mode<synchronous>, transform_indices = @transform_3, window_bounds = array<i64: 1, 32>}, {transform_indices = @transform_4, window_bounds = array<i64: 4, 4, 16>}, {transform_indices = @transform_5, window_bounds = array<i64: 4, 4, 16>}, {pipeline_mode = #tpu.pipeline_mode<synchronous>, transform_indices = @transform_6, window_bounds = array<i64: 2, 4, 16>}]} {
    %c0_i32 = arith.constant 0 : i32
    %0 = arith.cmpi eq, %arg0, %c0_i32 : i32
    %1 = arith.extui %0 : i1 to i32
    %c0_i32_0 = arith.constant 0 : i32
    %2 = arith.cmpi ne, %1, %c0_i32_0 : i32
    scf.if %2 {
      %cst_74 = arith.constant 0.000000e+00 : f32
      %313 = vector.broadcast %cst_74 : f32 to vector<4x32xf32>
      %c0_75 = arith.constant 0 : index
      %c0_76 = arith.constant 0 : index
      %314 = vector.load %arg8[%c0_75, %c0_76] : memref<4x32xf32, #tpu.memory_space<vmem>>, vector<4x32xf32>
      tpu.vector_store %arg8[%c0_75, %c0_76], %313 {strides = array<i32>} : memref<4x32xf32, #tpu.memory_space<vmem>>, vector<4x32xf32>,
    } else {
    }
    %c0 = arith.constant 0 : index
    %c0_1 = arith.constant 0 : index
    %3 = vector.load %arg3[%c0, %c0_1] : memref<32x96xf32, #tpu.memory_space<vmem>>, vector<32x96xf32>
    %c0_2 = arith.constant 0 : index
    %c0_3 = arith.constant 0 : index
    %4 = vector.load %arg4[%c0_2, %c0_3] : memref<1x32xf32, #tpu.memory_space<vmem>>, vector<1x32xf32>
    %c0_4 = arith.constant 0 : index
    %c0_5 = arith.constant 0 : index
    %5 = vector.load %arg8[%c0_4, %c0_5] : memref<4x32xf32, #tpu.memory_space<vmem>>, vector<4x32xf32>
    %6 = vector.extract_strided_slice %5 {offsets = [0, 0], sizes = [4, 16], strides = [1, 1]} : vector<4x32xf32> to vector<4x16xf32>
    %7 = vector.extract_strided_slice %5 {offsets = [0, 16], sizes = [4, 16], strides = [1, 1]} : vector<4x32xf32> to vector<4x16xf32>
    %c0_i32_6 = arith.constant 0 : i32
    %c3_i32 = arith.constant 3 : i32
    %8 = arith.subi %c3_i32, %c0_i32_6 : i32
    %9 = tpu.concatenate %6, %7 in 1 : vector<4x16xf32>, vector<4x16xf32> -> vector<4x32xf32>
    %cst = arith.constant dense<0.000000e+00> : vector<4x96xf32>
    %10 = tpu.matmul %9, %3, %cst {dimension_numbers = #tpu.dot_dimension_numbers<[1], [0], [0], [1], [0, 0, 1, 1], [], []>} : vector<4x32xf32>, vector<32x96xf32>, vector<4x96xf32> -> vector<4x96xf32>
    %11 = arith.index_cast %c0_i32_6 : i32 to index
    %c0_7 = arith.constant 0 : index
    %c0_8 = arith.constant 0 : index
    %12 = vector.load %arg1[%11, %c0_7, %c0_8] : memref<4x4x48xf32, #tpu.memory_space<vmem>>, vector<1x4x48xf32>
    %13 = vector.shape_cast %12 : vector<1x4x48xf32> to vector<4x48xf32>
    %14 = arith.index_cast %8 : i32 to index
    %c0_9 = arith.constant 0 : index
    %c0_10 = arith.constant 0 : index
    %15 = vector.load %arg2[%14, %c0_9, %c0_10] : memref<4x4x48xf32, #tpu.memory_space<vmem>>, vector<1x4x48xf32>
    %16 = vector.shape_cast %15 : vector<1x4x48xf32> to vector<4x48xf32>
    %17 = vector.extract_strided_slice %13 {offsets = [0, 0], sizes = [4, 16], strides = [1, 1]} : vector<4x48xf32> to vector<4x16xf32>
    %18 = vector.extract_strided_slice %10 {offsets = [0, 0], sizes = [4, 16], strides = [1, 1]} : vector<4x96xf32> to vector<4x16xf32>
    %19 = arith.addf %17, %18 : vector<4x16xf32>
    %20 = arith.negf %19 : vector<4x16xf32>
    %21 = math.exp %20 : vector<4x16xf32>
    %cst_11 = arith.constant 1.000000e+00 : f32
    %22 = vector.broadcast %cst_11 : f32 to vector<4x16xf32>
    %23 = arith.addf %22, %21 : vector<4x16xf32>
    %24 = arith.divf %22, %23 : vector<4x16xf32>
    %25 = vector.extract_strided_slice %13 {offsets = [0, 16], sizes = [4, 16], strides = [1, 1]} : vector<4x48xf32> to vector<4x16xf32>
    %26 = vector.extract_strided_slice %10 {offsets = [0, 16], sizes = [4, 16], strides = [1, 1]} : vector<4x96xf32> to vector<4x16xf32>
    %27 = arith.addf %25, %26 : vector<4x16xf32>
    %28 = arith.negf %27 : vector<4x16xf32>
    %29 = math.exp %28 : vector<4x16xf32>
    %cst_12 = arith.constant 1.000000e+00 : f32
    %30 = vector.broadcast %cst_12 : f32 to vector<4x16xf32>
    %31 = arith.addf %30, %29 : vector<4x16xf32>
    %32 = arith.divf %30, %31 : vector<4x16xf32>
    %33 = vector.extract_strided_slice %13 {offsets = [0, 32], sizes = [4, 16], strides = [1, 1]} : vector<4x48xf32> to vector<4x16xf32>
    %34 = vector.extract_strided_slice %10 {offsets = [0, 32], sizes = [4, 16], strides = [1, 1]} : vector<4x96xf32> to vector<4x16xf32>
    %35 = vector.extract_strided_slice %4 {offsets = [0, 0], sizes = [1, 16], strides = [1, 1]} : vector<1x32xf32> to vector<1x16xf32>
    %36 = vector.broadcast %35 : vector<1x16xf32> to vector<4x16xf32>
    %37 = arith.addf %34, %36 : vector<4x16xf32>
    %38 = arith.mulf %24, %37 : vector<4x16xf32>
    %39 = arith.addf %33, %38 : vector<4x16xf32>
    %40 = math.tanh %39 : vector<4x16xf32>
    %cst_13 = arith.constant 1.000000e+00 : f32
    %41 = vector.broadcast %cst_13 : f32 to vector<4x16xf32>
    %42 = arith.subf %41, %32 : vector<4x16xf32>
    %43 = arith.mulf %42, %40 : vector<4x16xf32>
    %44 = arith.mulf %32, %6 : vector<4x16xf32>
    %45 = arith.addf %43, %44 : vector<4x16xf32>
    %46 = vector.extract_strided_slice %16 {offsets = [0, 0], sizes = [4, 16], strides = [1, 1]} : vector<4x48xf32> to vector<4x16xf32>
    %47 = vector.extract_strided_slice %10 {offsets = [0, 48], sizes = [4, 16], strides = [1, 1]} : vector<4x96xf32> to vector<4x16xf32>
    %48 = arith.addf %46, %47 : vector<4x16xf32>
    %49 = arith.negf %48 : vector<4x16xf32>
    %50 = math.exp %49 : vector<4x16xf32>
    %cst_14 = arith.constant 1.000000e+00 : f32
    %51 = vector.broadcast %cst_14 : f32 to vector<4x16xf32>
    %52 = arith.addf %51, %50 : vector<4x16xf32>
    %53 = arith.divf %51, %52 : vector<4x16xf32>
    %54 = vector.extract_strided_slice %16 {offsets = [0, 16], sizes = [4, 16], strides = [1, 1]} : vector<4x48xf32> to vector<4x16xf32>
    %55 = vector.extract_strided_slice %10 {offsets = [0, 64], sizes = [4, 16], strides = [1, 1]} : vector<4x96xf32> to vector<4x16xf32>
    %56 = arith.addf %54, %55 : vector<4x16xf32>
    %57 = arith.negf %56 : vector<4x16xf32>
    %58 = math.exp %57 : vector<4x16xf32>
    %cst_15 = arith.constant 1.000000e+00 : f32
    %59 = vector.broadcast %cst_15 : f32 to vector<4x16xf32>
    %60 = arith.addf %59, %58 : vector<4x16xf32>
    %61 = arith.divf %59, %60 : vector<4x16xf32>
    %62 = vector.extract_strided_slice %16 {offsets = [0, 32], sizes = [4, 16], strides = [1, 1]} : vector<4x48xf32> to vector<4x16xf32>
    %63 = vector.extract_strided_slice %10 {offsets = [0, 80], sizes = [4, 16], strides = [1, 1]} : vector<4x96xf32> to vector<4x16xf32>
    %64 = vector.extract_strided_slice %4 {offsets = [0, 16], sizes = [1, 16], strides = [1, 1]} : vector<1x32xf32> to vector<1x16xf32>
    %65 = vector.broadcast %64 : vector<1x16xf32> to vector<4x16xf32>
    %66 = arith.addf %63, %65 : vector<4x16xf32>
    %67 = arith.mulf %53, %66 : vector<4x16xf32>
    %68 = arith.addf %62, %67 : vector<4x16xf32>
    %69 = math.tanh %68 : vector<4x16xf32>
    %cst_16 = arith.constant 1.000000e+00 : f32
    %70 = vector.broadcast %cst_16 : f32 to vector<4x16xf32>
    %71 = arith.subf %70, %61 : vector<4x16xf32>
    %72 = arith.mulf %71, %69 : vector<4x16xf32>
    %73 = arith.mulf %61, %7 : vector<4x16xf32>
    %74 = arith.addf %72, %73 : vector<4x16xf32>
    %75 = arith.index_cast %c0_i32_6 : i32 to index
    %c0_17 = arith.constant 0 : index
    %c0_18 = arith.constant 0 : index
    %76 = vector.load %arg5[%75, %c0_17, %c0_18] : memref<4x4x16xf32, #tpu.memory_space<vmem>>, vector<1x4x16xf32>
    %77 = vector.shape_cast %76 : vector<1x4x16xf32> to vector<4x16xf32>
    %78 = vector.shape_cast %45 : vector<4x16xf32> to vector<1x4x16xf32>
    tpu.vector_store %arg5[%75, %c0_17, %c0_18], %78 {strides = array<i32>} : memref<4x4x16xf32, #tpu.memory_space<vmem>>, vector<1x4x16xf32>,
    %79 = arith.index_cast %8 : i32 to index
    %c0_19 = arith.constant 0 : index
    %c0_20 = arith.constant 0 : index
    %80 = vector.load %arg6[%79, %c0_19, %c0_20] : memref<4x4x16xf32, #tpu.memory_space<vmem>>, vector<1x4x16xf32>
    %81 = vector.shape_cast %80 : vector<1x4x16xf32> to vector<4x16xf32>
    %82 = vector.shape_cast %74 : vector<4x16xf32> to vector<1x4x16xf32>
    tpu.vector_store %arg6[%79, %c0_19, %c0_20], %82 {strides = array<i32>} : memref<4x4x16xf32, #tpu.memory_space<vmem>>, vector<1x4x16xf32>,
    %c1_i32 = arith.constant 1 : i32
    %c3_i32_21 = arith.constant 3 : i32
    %83 = arith.subi %c3_i32_21, %c1_i32 : i32
    %84 = tpu.concatenate %45, %74 in 1 : vector<4x16xf32>, vector<4x16xf32> -> vector<4x32xf32>
    %cst_22 = arith.constant dense<0.000000e+00> : vector<4x96xf32>
    %85 = tpu.matmul %84, %3, %cst_22 {dimension_numbers = #tpu.dot_dimension_numbers<[1], [0], [0], [1], [0, 0, 1, 1], [], []>} : vector<4x32xf32>, vector<32x96xf32>, vector<4x96xf32> -> vector<4x96xf32>
    %86 = arith.index_cast %c1_i32 : i32 to index
    %c0_23 = arith.constant 0 : index
    %c0_24 = arith.constant 0 : index
    %87 = vector.load %arg1[%86, %c0_23, %c0_24] : memref<4x4x48xf32, #tpu.memory_space<vmem>>, vector<1x4x48xf32>
    %88 = vector.shape_cast %87 : vector<1x4x48xf32> to vector<4x48xf32>
    %89 = arith.index_cast %83 : i32 to index
    %c0_25 = arith.constant 0 : index
    %c0_26 = arith.constant 0 : index
    %90 = vector.load %arg2[%89, %c0_25, %c0_26] : memref<4x4x48xf32, #tpu.memory_space<vmem>>, vector<1x4x48xf32>
    %91 = vector.shape_cast %90 : vector<1x4x48xf32> to vector<4x48xf32>
    %92 = vector.extract_strided_slice %88 {offsets = [0, 0], sizes = [4, 16], strides = [1, 1]} : vector<4x48xf32> to vector<4x16xf32>
    %93 = vector.extract_strided_slice %85 {offsets = [0, 0], sizes = [4, 16], strides = [1, 1]} : vector<4x96xf32> to vector<4x16xf32>
    %94 = arith.addf %92, %93 : vector<4x16xf32>
    %95 = arith.negf %94 : vector<4x16xf32>
    %96 = math.exp %95 : vector<4x16xf32>
    %cst_27 = arith.constant 1.000000e+00 : f32
    %97 = vector.broadcast %cst_27 : f32 to vector<4x16xf32>
    %98 = arith.addf %97, %96 : vector<4x16xf32>
    %99 = arith.divf %97, %98 : vector<4x16xf32>
    %100 = vector.extract_strided_slice %88 {offsets = [0, 16], sizes = [4, 16], strides = [1, 1]} : vector<4x48xf32> to vector<4x16xf32>
    %101 = vector.extract_strided_slice %85 {offsets = [0, 16], sizes = [4, 16], strides = [1, 1]} : vector<4x96xf32> to vector<4x16xf32>
    %102 = arith.addf %100, %101 : vector<4x16xf32>
    %103 = arith.negf %102 : vector<4x16xf32>
    %104 = math.exp %103 : vector<4x16xf32>
    %cst_28 = arith.constant 1.000000e+00 : f32
    %105 = vector.broadcast %cst_28 : f32 to vector<4x16xf32>
    %106 = arith.addf %105, %104 : vector<4x16xf32>
    %107 = arith.divf %105, %106 : vector<4x16xf32>
    %108 = vector.extract_strided_slice %88 {offsets = [0, 32], sizes = [4, 16], strides = [1, 1]} : vector<4x48xf32> to vector<4x16xf32>
    %109 = vector.extract_strided_slice %85 {offsets = [0, 32], sizes = [4, 16], strides = [1, 1]} : vector<4x96xf32> to vector<4x16xf32>
    %110 = vector.extract_strided_slice %4 {offsets = [0, 0], sizes = [1, 16], strides = [1, 1]} : vector<1x32xf32> to vector<1x16xf32>
    %111 = vector.broadcast %110 : vector<1x16xf32> to vector<4x16xf32>
    %112 = arith.addf %109, %111 : vector<4x16xf32>
    %113 = arith.mulf %99, %112 : vector<4x16xf32>
    %114 = arith.addf %108, %113 : vector<4x16xf32>
    %115 = math.tanh %114 : vector<4x16xf32>
    %cst_29 = arith.constant 1.000000e+00 : f32
    %116 = vector.broadcast %cst_29 : f32 to vector<4x16xf32>
    %117 = arith.subf %116, %107 : vector<4x16xf32>
    %118 = arith.mulf %117, %115 : vector<4x16xf32>
    %119 = arith.mulf %107, %45 : vector<4x16xf32>
    %120 = arith.addf %118, %119 : vector<4x16xf32>
    %121 = vector.extract_strided_slice %91 {offsets = [0, 0], sizes = [4, 16], strides = [1, 1]} : vector<4x48xf32> to vector<4x16xf32>
    %122 = vector.extract_strided_slice %85 {offsets = [0, 48], sizes = [4, 16], strides = [1, 1]} : vector<4x96xf32> to vector<4x16xf32>
    %123 = arith.addf %121, %122 : vector<4x16xf32>
    %124 = arith.negf %123 : vector<4x16xf32>
    %125 = math.exp %124 : vector<4x16xf32>
    %cst_30 = arith.constant 1.000000e+00 : f32
    %126 = vector.broadcast %cst_30 : f32 to vector<4x16xf32>
    %127 = arith.addf %126, %125 : vector<4x16xf32>
    %128 = arith.divf %126, %127 : vector<4x16xf32>
    %129 = vector.extract_strided_slice %91 {offsets = [0, 16], sizes = [4, 16], strides = [1, 1]} : vector<4x48xf32> to vector<4x16xf32>
    %130 = vector.extract_strided_slice %85 {offsets = [0, 64], sizes = [4, 16], strides = [1, 1]} : vector<4x96xf32> to vector<4x16xf32>
    %131 = arith.addf %129, %130 : vector<4x16xf32>
    %132 = arith.negf %131 : vector<4x16xf32>
    %133 = math.exp %132 : vector<4x16xf32>
    %cst_31 = arith.constant 1.000000e+00 : f32
    %134 = vector.broadcast %cst_31 : f32 to vector<4x16xf32>
    %135 = arith.addf %134, %133 : vector<4x16xf32>
    %136 = arith.divf %134, %135 : vector<4x16xf32>
    %137 = vector.extract_strided_slice %91 {offsets = [0, 32], sizes = [4, 16], strides = [1, 1]} : vector<4x48xf32> to vector<4x16xf32>
    %138 = vector.extract_strided_slice %85 {offsets = [0, 80], sizes = [4, 16], strides = [1, 1]} : vector<4x96xf32> to vector<4x16xf32>
    %139 = vector.extract_strided_slice %4 {offsets = [0, 16], sizes = [1, 16], strides = [1, 1]} : vector<1x32xf32> to vector<1x16xf32>
    %140 = vector.broadcast %139 : vector<1x16xf32> to vector<4x16xf32>
    %141 = arith.addf %138, %140 : vector<4x16xf32>
    %142 = arith.mulf %128, %141 : vector<4x16xf32>
    %143 = arith.addf %137, %142 : vector<4x16xf32>
    %144 = math.tanh %143 : vector<4x16xf32>
    %cst_32 = arith.constant 1.000000e+00 : f32
    %145 = vector.broadcast %cst_32 : f32 to vector<4x16xf32>
    %146 = arith.subf %145, %136 : vector<4x16xf32>
    %147 = arith.mulf %146, %144 : vector<4x16xf32>
    %148 = arith.mulf %136, %74 : vector<4x16xf32>
    %149 = arith.addf %147, %148 : vector<4x16xf32>
    %150 = arith.index_cast %c1_i32 : i32 to index
    %c0_33 = arith.constant 0 : index
    %c0_34 = arith.constant 0 : index
    %151 = vector.load %arg5[%150, %c0_33, %c0_34] : memref<4x4x16xf32, #tpu.memory_space<vmem>>, vector<1x4x16xf32>
    %152 = vector.shape_cast %151 : vector<1x4x16xf32> to vector<4x16xf32>
    %153 = vector.shape_cast %120 : vector<4x16xf32> to vector<1x4x16xf32>
    tpu.vector_store %arg5[%150, %c0_33, %c0_34], %153 {strides = array<i32>} : memref<4x4x16xf32, #tpu.memory_space<vmem>>, vector<1x4x16xf32>,
    %154 = arith.index_cast %83 : i32 to index
    %c0_35 = arith.constant 0 : index
    %c0_36 = arith.constant 0 : index
    %155 = vector.load %arg6[%154, %c0_35, %c0_36] : memref<4x4x16xf32, #tpu.memory_space<vmem>>, vector<1x4x16xf32>
    %156 = vector.shape_cast %155 : vector<1x4x16xf32> to vector<4x16xf32>
    %157 = vector.shape_cast %149 : vector<4x16xf32> to vector<1x4x16xf32>
    tpu.vector_store %arg6[%154, %c0_35, %c0_36], %157 {strides = array<i32>} : memref<4x4x16xf32, #tpu.memory_space<vmem>>, vector<1x4x16xf32>,
    %c2_i32 = arith.constant 2 : i32
    %c3_i32_37 = arith.constant 3 : i32
    %158 = arith.subi %c3_i32_37, %c2_i32 : i32
    %159 = tpu.concatenate %120, %149 in 1 : vector<4x16xf32>, vector<4x16xf32> -> vector<4x32xf32>
    %cst_38 = arith.constant dense<0.000000e+00> : vector<4x96xf32>
    %160 = tpu.matmul %159, %3, %cst_38 {dimension_numbers = #tpu.dot_dimension_numbers<[1], [0], [0], [1], [0, 0, 1, 1], [], []>} : vector<4x32xf32>, vector<32x96xf32>, vector<4x96xf32> -> vector<4x96xf32>
    %161 = arith.index_cast %c2_i32 : i32 to index
    %c0_39 = arith.constant 0 : index
    %c0_40 = arith.constant 0 : index
    %162 = vector.load %arg1[%161, %c0_39, %c0_40] : memref<4x4x48xf32, #tpu.memory_space<vmem>>, vector<1x4x48xf32>
    %163 = vector.shape_cast %162 : vector<1x4x48xf32> to vector<4x48xf32>
    %164 = arith.index_cast %158 : i32 to index
    %c0_41 = arith.constant 0 : index
    %c0_42 = arith.constant 0 : index
    %165 = vector.load %arg2[%164, %c0_41, %c0_42] : memref<4x4x48xf32, #tpu.memory_space<vmem>>, vector<1x4x48xf32>
    %166 = vector.shape_cast %165 : vector<1x4x48xf32> to vector<4x48xf32>
    %167 = vector.extract_strided_slice %163 {offsets = [0, 0], sizes = [4, 16], strides = [1, 1]} : vector<4x48xf32> to vector<4x16xf32>
    %168 = vector.extract_strided_slice %160 {offsets = [0, 0], sizes = [4, 16], strides = [1, 1]} : vector<4x96xf32> to vector<4x16xf32>
    %169 = arith.addf %167, %168 : vector<4x16xf32>
    %170 = arith.negf %169 : vector<4x16xf32>
    %171 = math.exp %170 : vector<4x16xf32>
    %cst_43 = arith.constant 1.000000e+00 : f32
    %172 = vector.broadcast %cst_43 : f32 to vector<4x16xf32>
    %173 = arith.addf %172, %171 : vector<4x16xf32>
    %174 = arith.divf %172, %173 : vector<4x16xf32>
    %175 = vector.extract_strided_slice %163 {offsets = [0, 16], sizes = [4, 16], strides = [1, 1]} : vector<4x48xf32> to vector<4x16xf32>
    %176 = vector.extract_strided_slice %160 {offsets = [0, 16], sizes = [4, 16], strides = [1, 1]} : vector<4x96xf32> to vector<4x16xf32>
    %177 = arith.addf %175, %176 : vector<4x16xf32>
    %178 = arith.negf %177 : vector<4x16xf32>
    %179 = math.exp %178 : vector<4x16xf32>
    %cst_44 = arith.constant 1.000000e+00 : f32
    %180 = vector.broadcast %cst_44 : f32 to vector<4x16xf32>
    %181 = arith.addf %180, %179 : vector<4x16xf32>
    %182 = arith.divf %180, %181 : vector<4x16xf32>
    %183 = vector.extract_strided_slice %163 {offsets = [0, 32], sizes = [4, 16], strides = [1, 1]} : vector<4x48xf32> to vector<4x16xf32>
    %184 = vector.extract_strided_slice %160 {offsets = [0, 32], sizes = [4, 16], strides = [1, 1]} : vector<4x96xf32> to vector<4x16xf32>
    %185 = vector.extract_strided_slice %4 {offsets = [0, 0], sizes = [1, 16], strides = [1, 1]} : vector<1x32xf32> to vector<1x16xf32>
    %186 = vector.broadcast %185 : vector<1x16xf32> to vector<4x16xf32>
    %187 = arith.addf %184, %186 : vector<4x16xf32>
    %188 = arith.mulf %174, %187 : vector<4x16xf32>
    %189 = arith.addf %183, %188 : vector<4x16xf32>
    %190 = math.tanh %189 : vector<4x16xf32>
    %cst_45 = arith.constant 1.000000e+00 : f32
    %191 = vector.broadcast %cst_45 : f32 to vector<4x16xf32>
    %192 = arith.subf %191, %182 : vector<4x16xf32>
    %193 = arith.mulf %192, %190 : vector<4x16xf32>
    %194 = arith.mulf %182, %120 : vector<4x16xf32>
    %195 = arith.addf %193, %194 : vector<4x16xf32>
    %196 = vector.extract_strided_slice %166 {offsets = [0, 0], sizes = [4, 16], strides = [1, 1]} : vector<4x48xf32> to vector<4x16xf32>
    %197 = vector.extract_strided_slice %160 {offsets = [0, 48], sizes = [4, 16], strides = [1, 1]} : vector<4x96xf32> to vector<4x16xf32>
    %198 = arith.addf %196, %197 : vector<4x16xf32>
    %199 = arith.negf %198 : vector<4x16xf32>
    %200 = math.exp %199 : vector<4x16xf32>
    %cst_46 = arith.constant 1.000000e+00 : f32
    %201 = vector.broadcast %cst_46 : f32 to vector<4x16xf32>
    %202 = arith.addf %201, %200 : vector<4x16xf32>
    %203 = arith.divf %201, %202 : vector<4x16xf32>
    %204 = vector.extract_strided_slice %166 {offsets = [0, 16], sizes = [4, 16], strides = [1, 1]} : vector<4x48xf32> to vector<4x16xf32>
    %205 = vector.extract_strided_slice %160 {offsets = [0, 64], sizes = [4, 16], strides = [1, 1]} : vector<4x96xf32> to vector<4x16xf32>
    %206 = arith.addf %204, %205 : vector<4x16xf32>
    %207 = arith.negf %206 : vector<4x16xf32>
    %208 = math.exp %207 : vector<4x16xf32>
    %cst_47 = arith.constant 1.000000e+00 : f32
    %209 = vector.broadcast %cst_47 : f32 to vector<4x16xf32>
    %210 = arith.addf %209, %208 : vector<4x16xf32>
    %211 = arith.divf %209, %210 : vector<4x16xf32>
    %212 = vector.extract_strided_slice %166 {offsets = [0, 32], sizes = [4, 16], strides = [1, 1]} : vector<4x48xf32> to vector<4x16xf32>
    %213 = vector.extract_strided_slice %160 {offsets = [0, 80], sizes = [4, 16], strides = [1, 1]} : vector<4x96xf32> to vector<4x16xf32>
    %214 = vector.extract_strided_slice %4 {offsets = [0, 16], sizes = [1, 16], strides = [1, 1]} : vector<1x32xf32> to vector<1x16xf32>
    %215 = vector.broadcast %214 : vector<1x16xf32> to vector<4x16xf32>
    %216 = arith.addf %213, %215 : vector<4x16xf32>
    %217 = arith.mulf %203, %216 : vector<4x16xf32>
    %218 = arith.addf %212, %217 : vector<4x16xf32>
    %219 = math.tanh %218 : vector<4x16xf32>
    %cst_48 = arith.constant 1.000000e+00 : f32
    %220 = vector.broadcast %cst_48 : f32 to vector<4x16xf32>
    %221 = arith.subf %220, %211 : vector<4x16xf32>
    %222 = arith.mulf %221, %219 : vector<4x16xf32>
    %223 = arith.mulf %211, %149 : vector<4x16xf32>
    %224 = arith.addf %222, %223 : vector<4x16xf32>
    %225 = arith.index_cast %c2_i32 : i32 to index
    %c0_49 = arith.constant 0 : index
    %c0_50 = arith.constant 0 : index
    %226 = vector.load %arg5[%225, %c0_49, %c0_50] : memref<4x4x16xf32, #tpu.memory_space<vmem>>, vector<1x4x16xf32>
    %227 = vector.shape_cast %226 : vector<1x4x16xf32> to vector<4x16xf32>
    %228 = vector.shape_cast %195 : vector<4x16xf32> to vector<1x4x16xf32>
    tpu.vector_store %arg5[%225, %c0_49, %c0_50], %228 {strides = array<i32>} : memref<4x4x16xf32, #tpu.memory_space<vmem>>, vector<1x4x16xf32>,
    %229 = arith.index_cast %158 : i32 to index
    %c0_51 = arith.constant 0 : index
    %c0_52 = arith.constant 0 : index
    %230 = vector.load %arg6[%229, %c0_51, %c0_52] : memref<4x4x16xf32, #tpu.memory_space<vmem>>, vector<1x4x16xf32>
    %231 = vector.shape_cast %230 : vector<1x4x16xf32> to vector<4x16xf32>
    %232 = vector.shape_cast %224 : vector<4x16xf32> to vector<1x4x16xf32>
    tpu.vector_store %arg6[%229, %c0_51, %c0_52], %232 {strides = array<i32>} : memref<4x4x16xf32, #tpu.memory_space<vmem>>, vector<1x4x16xf32>,
    %c3_i32_53 = arith.constant 3 : i32
    %c3_i32_54 = arith.constant 3 : i32
    %233 = arith.subi %c3_i32_54, %c3_i32_53 : i32
    %234 = tpu.concatenate %195, %224 in 1 : vector<4x16xf32>, vector<4x16xf32> -> vector<4x32xf32>
    %cst_55 = arith.constant dense<0.000000e+00> : vector<4x96xf32>
    %235 = tpu.matmul %234, %3, %cst_55 {dimension_numbers = #tpu.dot_dimension_numbers<[1], [0], [0], [1], [0, 0, 1, 1], [], []>} : vector<4x32xf32>, vector<32x96xf32>, vector<4x96xf32> -> vector<4x96xf32>
    %236 = arith.index_cast %c3_i32_53 : i32 to index
    %c0_56 = arith.constant 0 : index
    %c0_57 = arith.constant 0 : index
    %237 = vector.load %arg1[%236, %c0_56, %c0_57] : memref<4x4x48xf32, #tpu.memory_space<vmem>>, vector<1x4x48xf32>
    %238 = vector.shape_cast %237 : vector<1x4x48xf32> to vector<4x48xf32>
    %239 = arith.index_cast %233 : i32 to index
    %c0_58 = arith.constant 0 : index
    %c0_59 = arith.constant 0 : index
    %240 = vector.load %arg2[%239, %c0_58, %c0_59] : memref<4x4x48xf32, #tpu.memory_space<vmem>>, vector<1x4x48xf32>
    %241 = vector.shape_cast %240 : vector<1x4x48xf32> to vector<4x48xf32>
    %242 = vector.extract_strided_slice %238 {offsets = [0, 0], sizes = [4, 16], strides = [1, 1]} : vector<4x48xf32> to vector<4x16xf32>
    %243 = vector.extract_strided_slice %235 {offsets = [0, 0], sizes = [4, 16], strides = [1, 1]} : vector<4x96xf32> to vector<4x16xf32>
    %244 = arith.addf %242, %243 : vector<4x16xf32>
    %245 = arith.negf %244 : vector<4x16xf32>
    %246 = math.exp %245 : vector<4x16xf32>
    %cst_60 = arith.constant 1.000000e+00 : f32
    %247 = vector.broadcast %cst_60 : f32 to vector<4x16xf32>
    %248 = arith.addf %247, %246 : vector<4x16xf32>
    %249 = arith.divf %247, %248 : vector<4x16xf32>
    %250 = vector.extract_strided_slice %238 {offsets = [0, 16], sizes = [4, 16], strides = [1, 1]} : vector<4x48xf32> to vector<4x16xf32>
    %251 = vector.extract_strided_slice %235 {offsets = [0, 16], sizes = [4, 16], strides = [1, 1]} : vector<4x96xf32> to vector<4x16xf32>
    %252 = arith.addf %250, %251 : vector<4x16xf32>
    %253 = arith.negf %252 : vector<4x16xf32>
    %254 = math.exp %253 : vector<4x16xf32>
    %cst_61 = arith.constant 1.000000e+00 : f32
    %255 = vector.broadcast %cst_61 : f32 to vector<4x16xf32>
    %256 = arith.addf %255, %254 : vector<4x16xf32>
    %257 = arith.divf %255, %256 : vector<4x16xf32>
    %258 = vector.extract_strided_slice %238 {offsets = [0, 32], sizes = [4, 16], strides = [1, 1]} : vector<4x48xf32> to vector<4x16xf32>
    %259 = vector.extract_strided_slice %235 {offsets = [0, 32], sizes = [4, 16], strides = [1, 1]} : vector<4x96xf32> to vector<4x16xf32>
    %260 = vector.extract_strided_slice %4 {offsets = [0, 0], sizes = [1, 16], strides = [1, 1]} : vector<1x32xf32> to vector<1x16xf32>
    %261 = vector.broadcast %260 : vector<1x16xf32> to vector<4x16xf32>
    %262 = arith.addf %259, %261 : vector<4x16xf32>
    %263 = arith.mulf %249, %262 : vector<4x16xf32>
    %264 = arith.addf %258, %263 : vector<4x16xf32>
    %265 = math.tanh %264 : vector<4x16xf32>
    %cst_62 = arith.constant 1.000000e+00 : f32
    %266 = vector.broadcast %cst_62 : f32 to vector<4x16xf32>
    %267 = arith.subf %266, %257 : vector<4x16xf32>
    %268 = arith.mulf %267, %265 : vector<4x16xf32>
    %269 = arith.mulf %257, %195 : vector<4x16xf32>
    %270 = arith.addf %268, %269 : vector<4x16xf32>
    %271 = vector.extract_strided_slice %241 {offsets = [0, 0], sizes = [4, 16], strides = [1, 1]} : vector<4x48xf32> to vector<4x16xf32>
    %272 = vector.extract_strided_slice %235 {offsets = [0, 48], sizes = [4, 16], strides = [1, 1]} : vector<4x96xf32> to vector<4x16xf32>
    %273 = arith.addf %271, %272 : vector<4x16xf32>
    %274 = arith.negf %273 : vector<4x16xf32>
    %275 = math.exp %274 : vector<4x16xf32>
    %cst_63 = arith.constant 1.000000e+00 : f32
    %276 = vector.broadcast %cst_63 : f32 to vector<4x16xf32>
    %277 = arith.addf %276, %275 : vector<4x16xf32>
    %278 = arith.divf %276, %277 : vector<4x16xf32>
    %279 = vector.extract_strided_slice %241 {offsets = [0, 16], sizes = [4, 16], strides = [1, 1]} : vector<4x48xf32> to vector<4x16xf32>
    %280 = vector.extract_strided_slice %235 {offsets = [0, 64], sizes = [4, 16], strides = [1, 1]} : vector<4x96xf32> to vector<4x16xf32>
    %281 = arith.addf %279, %280 : vector<4x16xf32>
    %282 = arith.negf %281 : vector<4x16xf32>
    %283 = math.exp %282 : vector<4x16xf32>
    %cst_64 = arith.constant 1.000000e+00 : f32
    %284 = vector.broadcast %cst_64 : f32 to vector<4x16xf32>
    %285 = arith.addf %284, %283 : vector<4x16xf32>
    %286 = arith.divf %284, %285 : vector<4x16xf32>
    %287 = vector.extract_strided_slice %241 {offsets = [0, 32], sizes = [4, 16], strides = [1, 1]} : vector<4x48xf32> to vector<4x16xf32>
    %288 = vector.extract_strided_slice %235 {offsets = [0, 80], sizes = [4, 16], strides = [1, 1]} : vector<4x96xf32> to vector<4x16xf32>
    %289 = vector.extract_strided_slice %4 {offsets = [0, 16], sizes = [1, 16], strides = [1, 1]} : vector<1x32xf32> to vector<1x16xf32>
    %290 = vector.broadcast %289 : vector<1x16xf32> to vector<4x16xf32>
    %291 = arith.addf %288, %290 : vector<4x16xf32>
    %292 = arith.mulf %278, %291 : vector<4x16xf32>
    %293 = arith.addf %287, %292 : vector<4x16xf32>
    %294 = math.tanh %293 : vector<4x16xf32>
    %cst_65 = arith.constant 1.000000e+00 : f32
    %295 = vector.broadcast %cst_65 : f32 to vector<4x16xf32>
    %296 = arith.subf %295, %286 : vector<4x16xf32>
    %297 = arith.mulf %296, %294 : vector<4x16xf32>
    %298 = arith.mulf %286, %224 : vector<4x16xf32>
    %299 = arith.addf %297, %298 : vector<4x16xf32>
    %300 = arith.index_cast %c3_i32_53 : i32 to index
    %c0_66 = arith.constant 0 : index
    %c0_67 = arith.constant 0 : index
    %301 = vector.load %arg5[%300, %c0_66, %c0_67] : memref<4x4x16xf32, #tpu.memory_space<vmem>>, vector<1x4x16xf32>
    %302 = vector.shape_cast %301 : vector<1x4x16xf32> to vector<4x16xf32>
    %303 = vector.shape_cast %270 : vector<4x16xf32> to vector<1x4x16xf32>
    tpu.vector_store %arg5[%300, %c0_66, %c0_67], %303 {strides = array<i32>} : memref<4x4x16xf32, #tpu.memory_space<vmem>>, vector<1x4x16xf32>,
    %304 = arith.index_cast %233 : i32 to index
    %c0_68 = arith.constant 0 : index
    %c0_69 = arith.constant 0 : index
    %305 = vector.load %arg6[%304, %c0_68, %c0_69] : memref<4x4x16xf32, #tpu.memory_space<vmem>>, vector<1x4x16xf32>
    %306 = vector.shape_cast %305 : vector<1x4x16xf32> to vector<4x16xf32>
    %307 = vector.shape_cast %299 : vector<4x16xf32> to vector<1x4x16xf32>
    tpu.vector_store %arg6[%304, %c0_68, %c0_69], %307 {strides = array<i32>} : memref<4x4x16xf32, #tpu.memory_space<vmem>>, vector<1x4x16xf32>,
    %c4_i32 = arith.constant 4 : i32
    %308 = tpu.concatenate %270, %299 in 1 : vector<4x16xf32>, vector<4x16xf32> -> vector<4x32xf32>
    %c0_70 = arith.constant 0 : index
    %c0_71 = arith.constant 0 : index
    %309 = vector.load %arg8[%c0_70, %c0_71] : memref<4x32xf32, #tpu.memory_space<vmem>>, vector<4x32xf32>
    tpu.vector_store %arg8[%c0_70, %c0_71], %308 {strides = array<i32>} : memref<4x32xf32, #tpu.memory_space<vmem>>, vector<4x32xf32>,
    %c1_i32_72 = arith.constant 1 : i32
    %310 = arith.cmpi eq, %arg0, %c1_i32_72 : i32
    %311 = arith.extui %310 : i1 to i32
    %c0_i32_73 = arith.constant 0 : i32
    %312 = arith.cmpi ne, %311, %c0_i32_73 : i32
    scf.if %312 {
      %c0_74 = arith.constant 0 : index
      %c0_75 = arith.constant 0 : index
      %c0_76 = arith.constant 0 : index
      %313 = vector.load %arg7[%c0_74, %c0_75, %c0_76] : memref<2x4x16xf32, #tpu.memory_space<vmem>>, vector<1x4x16xf32>
      %314 = vector.shape_cast %313 : vector<1x4x16xf32> to vector<4x16xf32>
      %315 = vector.shape_cast %270 : vector<4x16xf32> to vector<1x4x16xf32>
      tpu.vector_store %arg7[%c0_74, %c0_75, %c0_76], %315 {strides = array<i32>} : memref<2x4x16xf32, #tpu.memory_space<vmem>>, vector<1x4x16xf32>,
      %c1 = arith.constant 1 : index
      %c0_77 = arith.constant 0 : index
      %c0_78 = arith.constant 0 : index
      %316 = vector.load %arg7[%c1, %c0_77, %c0_78] : memref<2x4x16xf32, #tpu.memory_space<vmem>>, vector<1x4x16xf32>
      %317 = vector.shape_cast %316 : vector<1x4x16xf32> to vector<4x16xf32>
      %318 = vector.shape_cast %299 : vector<4x16xf32> to vector<1x4x16xf32>
      tpu.vector_store %arg7[%c1, %c0_77, %c0_78], %318 {strides = array<i32>} : memref<2x4x16xf32, #tpu.memory_space<vmem>>, vector<1x4x16xf32>,
    } else {
    }
    return
  }
  func.func @transform_0(%arg0: i32) -> (i32, i32, i32) {
    %c0_i32 = arith.constant 0 : i32
    %c0_i32_0 = arith.constant 0 : i32
    %c0_i32_1 = arith.constant 0 : i32
    return %arg0, %c0_i32, %c0_i32_0 : i32, i32, i32
  }
  func.func @transform_1(%arg0: i32) -> (i32, i32, i32) {
    %c1_i32 = arith.constant 1 : i32
    %0 = arith.subi %c1_i32, %arg0 : i32
    %c0_i32 = arith.constant 0 : i32
    %c0_i32_0 = arith.constant 0 : i32
    %c0_i32_1 = arith.constant 0 : i32
    return %0, %c0_i32, %c0_i32_0 : i32, i32, i32
  }
  func.func @transform_2(%arg0: i32) -> (i32, i32) {
    %c0_i32 = arith.constant 0 : i32
    %c0_i32_0 = arith.constant 0 : i32
    %c0_i32_1 = arith.constant 0 : i32
    return %c0_i32, %c0_i32_0 : i32, i32
  }
  func.func @transform_3(%arg0: i32) -> (i32, i32) {
    %c0_i32 = arith.constant 0 : i32
    %c0_i32_0 = arith.constant 0 : i32
    %c0_i32_1 = arith.constant 0 : i32
    return %c0_i32, %c0_i32_0 : i32, i32
  }
  func.func @transform_4(%arg0: i32) -> (i32, i32, i32) {
    %c0_i32 = arith.constant 0 : i32
    %c0_i32_0 = arith.constant 0 : i32
    %c0_i32_1 = arith.constant 0 : i32
    return %arg0, %c0_i32, %c0_i32_0 : i32, i32, i32
  }
  func.func @transform_5(%arg0: i32) -> (i32, i32, i32) {
    %c1_i32 = arith.constant 1 : i32
    %0 = arith.subi %c1_i32, %arg0 : i32
    %c0_i32 = arith.constant 0 : i32
    %c0_i32_0 = arith.constant 0 : i32
    %c0_i32_1 = arith.constant 0 : i32
    return %0, %c0_i32, %c0_i32_0 : i32, i32, i32
  }
  func.func @transform_6(%arg0: i32) -> (i32, i32, i32) {
    %c0_i32 = arith.constant 0 : i32
    %c0_i32_0 = arith.constant 0 : i32
    %c0_i32_1 = arith.constant 0 : i32
    %c0_i32_2 = arith.constant 0 : i32
    return %c0_i32, %c0_i32_0, %c0_i32_1 : i32, i32, i32
  }
}

module attributes {stable_mosaic.version = 11 : i64} {
  func.func @_gru_layer_kernel(%arg0: i32, %arg1: memref<4x4x48xf32, #tpu.memory_space<vmem>>, %arg2: memref<4x4x48xf32, #tpu.memory_space<vmem>>, %arg3: memref<32x96xf32, #tpu.memory_space<vmem>>, %arg4: memref<1x32xf32, #tpu.memory_space<vmem>>, %arg5: memref<2x4x16xf32, #tpu.memory_space<vmem>>, %arg6: memref<4x32xf32, #tpu.memory_space<vmem>>) attributes {dimension_semantics = [#tpu.dimension_semantics<arbitrary>], iteration_bounds = array<i64: 2>, scalar_prefetch = 0 : i64, scratch_operands = 1 : i64, tpu.core_type = #tpu.core_type<tc>, window_params = [{transform_indices = @transform_0, window_bounds = array<i64: 4, 4, 48>}, {transform_indices = @transform_1, window_bounds = array<i64: 4, 4, 48>}, {pipeline_mode = #tpu.pipeline_mode<synchronous>, transform_indices = @transform_2, window_bounds = array<i64: 32, 96>}, {pipeline_mode = #tpu.pipeline_mode<synchronous>, transform_indices = @transform_3, window_bounds = array<i64: 1, 32>}, {pipeline_mode = #tpu.pipeline_mode<synchronous>, transform_indices = @transform_4, window_bounds = array<i64: 2, 4, 16>}]} {
    %c0_i32 = arith.constant 0 : i32
    %0 = arith.cmpi eq, %arg0, %c0_i32 : i32
    %1 = arith.extui %0 : i1 to i32
    %c0_i32_0 = arith.constant 0 : i32
    %2 = arith.cmpi ne, %1, %c0_i32_0 : i32
    scf.if %2 {
      %cst_58 = arith.constant 0.000000e+00 : f32
      %281 = vector.broadcast %cst_58 : f32 to vector<4x32xf32>
      %c0_59 = arith.constant 0 : index
      %c0_60 = arith.constant 0 : index
      %282 = vector.load %arg6[%c0_59, %c0_60] : memref<4x32xf32, #tpu.memory_space<vmem>>, vector<4x32xf32>
      tpu.vector_store %arg6[%c0_59, %c0_60], %281 {strides = array<i32>} : memref<4x32xf32, #tpu.memory_space<vmem>>, vector<4x32xf32>,
    } else {
    }
    %c0 = arith.constant 0 : index
    %c0_1 = arith.constant 0 : index
    %3 = vector.load %arg3[%c0, %c0_1] : memref<32x96xf32, #tpu.memory_space<vmem>>, vector<32x96xf32>
    %c0_2 = arith.constant 0 : index
    %c0_3 = arith.constant 0 : index
    %4 = vector.load %arg4[%c0_2, %c0_3] : memref<1x32xf32, #tpu.memory_space<vmem>>, vector<1x32xf32>
    %c0_4 = arith.constant 0 : index
    %c0_5 = arith.constant 0 : index
    %5 = vector.load %arg6[%c0_4, %c0_5] : memref<4x32xf32, #tpu.memory_space<vmem>>, vector<4x32xf32>
    %6 = vector.extract_strided_slice %5 {offsets = [0, 0], sizes = [4, 16], strides = [1, 1]} : vector<4x32xf32> to vector<4x16xf32>
    %7 = vector.extract_strided_slice %5 {offsets = [0, 16], sizes = [4, 16], strides = [1, 1]} : vector<4x32xf32> to vector<4x16xf32>
    %c0_i32_6 = arith.constant 0 : i32
    %c3_i32 = arith.constant 3 : i32
    %8 = arith.subi %c3_i32, %c0_i32_6 : i32
    %9 = tpu.concatenate %6, %7 in 1 : vector<4x16xf32>, vector<4x16xf32> -> vector<4x32xf32>
    %cst = arith.constant dense<0.000000e+00> : vector<4x96xf32>
    %10 = tpu.matmul %9, %3, %cst {dimension_numbers = #tpu.dot_dimension_numbers<[1], [0], [0], [1], [0, 0, 1, 1], [], []>} : vector<4x32xf32>, vector<32x96xf32>, vector<4x96xf32> -> vector<4x96xf32>
    %11 = arith.index_cast %c0_i32_6 : i32 to index
    %c0_7 = arith.constant 0 : index
    %c0_8 = arith.constant 0 : index
    %12 = vector.load %arg1[%11, %c0_7, %c0_8] : memref<4x4x48xf32, #tpu.memory_space<vmem>>, vector<1x4x48xf32>
    %13 = vector.shape_cast %12 : vector<1x4x48xf32> to vector<4x48xf32>
    %14 = arith.index_cast %8 : i32 to index
    %c0_9 = arith.constant 0 : index
    %c0_10 = arith.constant 0 : index
    %15 = vector.load %arg2[%14, %c0_9, %c0_10] : memref<4x4x48xf32, #tpu.memory_space<vmem>>, vector<1x4x48xf32>
    %16 = vector.shape_cast %15 : vector<1x4x48xf32> to vector<4x48xf32>
    %17 = vector.extract_strided_slice %13 {offsets = [0, 0], sizes = [4, 16], strides = [1, 1]} : vector<4x48xf32> to vector<4x16xf32>
    %18 = vector.extract_strided_slice %10 {offsets = [0, 0], sizes = [4, 16], strides = [1, 1]} : vector<4x96xf32> to vector<4x16xf32>
    %19 = arith.addf %17, %18 : vector<4x16xf32>
    %20 = arith.negf %19 : vector<4x16xf32>
    %21 = math.exp %20 : vector<4x16xf32>
    %cst_11 = arith.constant 1.000000e+00 : f32
    %22 = vector.broadcast %cst_11 : f32 to vector<4x16xf32>
    %23 = arith.addf %22, %21 : vector<4x16xf32>
    %24 = arith.divf %22, %23 : vector<4x16xf32>
    %25 = vector.extract_strided_slice %13 {offsets = [0, 16], sizes = [4, 16], strides = [1, 1]} : vector<4x48xf32> to vector<4x16xf32>
    %26 = vector.extract_strided_slice %10 {offsets = [0, 16], sizes = [4, 16], strides = [1, 1]} : vector<4x96xf32> to vector<4x16xf32>
    %27 = arith.addf %25, %26 : vector<4x16xf32>
    %28 = arith.negf %27 : vector<4x16xf32>
    %29 = math.exp %28 : vector<4x16xf32>
    %cst_12 = arith.constant 1.000000e+00 : f32
    %30 = vector.broadcast %cst_12 : f32 to vector<4x16xf32>
    %31 = arith.addf %30, %29 : vector<4x16xf32>
    %32 = arith.divf %30, %31 : vector<4x16xf32>
    %33 = vector.extract_strided_slice %13 {offsets = [0, 32], sizes = [4, 16], strides = [1, 1]} : vector<4x48xf32> to vector<4x16xf32>
    %34 = vector.extract_strided_slice %10 {offsets = [0, 32], sizes = [4, 16], strides = [1, 1]} : vector<4x96xf32> to vector<4x16xf32>
    %35 = vector.extract_strided_slice %4 {offsets = [0, 0], sizes = [1, 16], strides = [1, 1]} : vector<1x32xf32> to vector<1x16xf32>
    %36 = vector.broadcast %35 : vector<1x16xf32> to vector<4x16xf32>
    %37 = arith.addf %34, %36 : vector<4x16xf32>
    %38 = arith.mulf %24, %37 : vector<4x16xf32>
    %39 = arith.addf %33, %38 : vector<4x16xf32>
    %40 = math.tanh %39 : vector<4x16xf32>
    %cst_13 = arith.constant 1.000000e+00 : f32
    %41 = vector.broadcast %cst_13 : f32 to vector<4x16xf32>
    %42 = arith.subf %41, %32 : vector<4x16xf32>
    %43 = arith.mulf %42, %40 : vector<4x16xf32>
    %44 = arith.mulf %32, %6 : vector<4x16xf32>
    %45 = arith.addf %43, %44 : vector<4x16xf32>
    %46 = vector.extract_strided_slice %16 {offsets = [0, 0], sizes = [4, 16], strides = [1, 1]} : vector<4x48xf32> to vector<4x16xf32>
    %47 = vector.extract_strided_slice %10 {offsets = [0, 48], sizes = [4, 16], strides = [1, 1]} : vector<4x96xf32> to vector<4x16xf32>
    %48 = arith.addf %46, %47 : vector<4x16xf32>
    %49 = arith.negf %48 : vector<4x16xf32>
    %50 = math.exp %49 : vector<4x16xf32>
    %cst_14 = arith.constant 1.000000e+00 : f32
    %51 = vector.broadcast %cst_14 : f32 to vector<4x16xf32>
    %52 = arith.addf %51, %50 : vector<4x16xf32>
    %53 = arith.divf %51, %52 : vector<4x16xf32>
    %54 = vector.extract_strided_slice %16 {offsets = [0, 16], sizes = [4, 16], strides = [1, 1]} : vector<4x48xf32> to vector<4x16xf32>
    %55 = vector.extract_strided_slice %10 {offsets = [0, 64], sizes = [4, 16], strides = [1, 1]} : vector<4x96xf32> to vector<4x16xf32>
    %56 = arith.addf %54, %55 : vector<4x16xf32>
    %57 = arith.negf %56 : vector<4x16xf32>
    %58 = math.exp %57 : vector<4x16xf32>
    %cst_15 = arith.constant 1.000000e+00 : f32
    %59 = vector.broadcast %cst_15 : f32 to vector<4x16xf32>
    %60 = arith.addf %59, %58 : vector<4x16xf32>
    %61 = arith.divf %59, %60 : vector<4x16xf32>
    %62 = vector.extract_strided_slice %16 {offsets = [0, 32], sizes = [4, 16], strides = [1, 1]} : vector<4x48xf32> to vector<4x16xf32>
    %63 = vector.extract_strided_slice %10 {offsets = [0, 80], sizes = [4, 16], strides = [1, 1]} : vector<4x96xf32> to vector<4x16xf32>
    %64 = vector.extract_strided_slice %4 {offsets = [0, 16], sizes = [1, 16], strides = [1, 1]} : vector<1x32xf32> to vector<1x16xf32>
    %65 = vector.broadcast %64 : vector<1x16xf32> to vector<4x16xf32>
    %66 = arith.addf %63, %65 : vector<4x16xf32>
    %67 = arith.mulf %53, %66 : vector<4x16xf32>
    %68 = arith.addf %62, %67 : vector<4x16xf32>
    %69 = math.tanh %68 : vector<4x16xf32>
    %cst_16 = arith.constant 1.000000e+00 : f32
    %70 = vector.broadcast %cst_16 : f32 to vector<4x16xf32>
    %71 = arith.subf %70, %61 : vector<4x16xf32>
    %72 = arith.mulf %71, %69 : vector<4x16xf32>
    %73 = arith.mulf %61, %7 : vector<4x16xf32>
    %74 = arith.addf %72, %73 : vector<4x16xf32>
    %c1_i32 = arith.constant 1 : i32
    %c3_i32_17 = arith.constant 3 : i32
    %75 = arith.subi %c3_i32_17, %c1_i32 : i32
    %76 = tpu.concatenate %45, %74 in 1 : vector<4x16xf32>, vector<4x16xf32> -> vector<4x32xf32>
    %cst_18 = arith.constant dense<0.000000e+00> : vector<4x96xf32>
    %77 = tpu.matmul %76, %3, %cst_18 {dimension_numbers = #tpu.dot_dimension_numbers<[1], [0], [0], [1], [0, 0, 1, 1], [], []>} : vector<4x32xf32>, vector<32x96xf32>, vector<4x96xf32> -> vector<4x96xf32>
    %78 = arith.index_cast %c1_i32 : i32 to index
    %c0_19 = arith.constant 0 : index
    %c0_20 = arith.constant 0 : index
    %79 = vector.load %arg1[%78, %c0_19, %c0_20] : memref<4x4x48xf32, #tpu.memory_space<vmem>>, vector<1x4x48xf32>
    %80 = vector.shape_cast %79 : vector<1x4x48xf32> to vector<4x48xf32>
    %81 = arith.index_cast %75 : i32 to index
    %c0_21 = arith.constant 0 : index
    %c0_22 = arith.constant 0 : index
    %82 = vector.load %arg2[%81, %c0_21, %c0_22] : memref<4x4x48xf32, #tpu.memory_space<vmem>>, vector<1x4x48xf32>
    %83 = vector.shape_cast %82 : vector<1x4x48xf32> to vector<4x48xf32>
    %84 = vector.extract_strided_slice %80 {offsets = [0, 0], sizes = [4, 16], strides = [1, 1]} : vector<4x48xf32> to vector<4x16xf32>
    %85 = vector.extract_strided_slice %77 {offsets = [0, 0], sizes = [4, 16], strides = [1, 1]} : vector<4x96xf32> to vector<4x16xf32>
    %86 = arith.addf %84, %85 : vector<4x16xf32>
    %87 = arith.negf %86 : vector<4x16xf32>
    %88 = math.exp %87 : vector<4x16xf32>
    %cst_23 = arith.constant 1.000000e+00 : f32
    %89 = vector.broadcast %cst_23 : f32 to vector<4x16xf32>
    %90 = arith.addf %89, %88 : vector<4x16xf32>
    %91 = arith.divf %89, %90 : vector<4x16xf32>
    %92 = vector.extract_strided_slice %80 {offsets = [0, 16], sizes = [4, 16], strides = [1, 1]} : vector<4x48xf32> to vector<4x16xf32>
    %93 = vector.extract_strided_slice %77 {offsets = [0, 16], sizes = [4, 16], strides = [1, 1]} : vector<4x96xf32> to vector<4x16xf32>
    %94 = arith.addf %92, %93 : vector<4x16xf32>
    %95 = arith.negf %94 : vector<4x16xf32>
    %96 = math.exp %95 : vector<4x16xf32>
    %cst_24 = arith.constant 1.000000e+00 : f32
    %97 = vector.broadcast %cst_24 : f32 to vector<4x16xf32>
    %98 = arith.addf %97, %96 : vector<4x16xf32>
    %99 = arith.divf %97, %98 : vector<4x16xf32>
    %100 = vector.extract_strided_slice %80 {offsets = [0, 32], sizes = [4, 16], strides = [1, 1]} : vector<4x48xf32> to vector<4x16xf32>
    %101 = vector.extract_strided_slice %77 {offsets = [0, 32], sizes = [4, 16], strides = [1, 1]} : vector<4x96xf32> to vector<4x16xf32>
    %102 = vector.extract_strided_slice %4 {offsets = [0, 0], sizes = [1, 16], strides = [1, 1]} : vector<1x32xf32> to vector<1x16xf32>
    %103 = vector.broadcast %102 : vector<1x16xf32> to vector<4x16xf32>
    %104 = arith.addf %101, %103 : vector<4x16xf32>
    %105 = arith.mulf %91, %104 : vector<4x16xf32>
    %106 = arith.addf %100, %105 : vector<4x16xf32>
    %107 = math.tanh %106 : vector<4x16xf32>
    %cst_25 = arith.constant 1.000000e+00 : f32
    %108 = vector.broadcast %cst_25 : f32 to vector<4x16xf32>
    %109 = arith.subf %108, %99 : vector<4x16xf32>
    %110 = arith.mulf %109, %107 : vector<4x16xf32>
    %111 = arith.mulf %99, %45 : vector<4x16xf32>
    %112 = arith.addf %110, %111 : vector<4x16xf32>
    %113 = vector.extract_strided_slice %83 {offsets = [0, 0], sizes = [4, 16], strides = [1, 1]} : vector<4x48xf32> to vector<4x16xf32>
    %114 = vector.extract_strided_slice %77 {offsets = [0, 48], sizes = [4, 16], strides = [1, 1]} : vector<4x96xf32> to vector<4x16xf32>
    %115 = arith.addf %113, %114 : vector<4x16xf32>
    %116 = arith.negf %115 : vector<4x16xf32>
    %117 = math.exp %116 : vector<4x16xf32>
    %cst_26 = arith.constant 1.000000e+00 : f32
    %118 = vector.broadcast %cst_26 : f32 to vector<4x16xf32>
    %119 = arith.addf %118, %117 : vector<4x16xf32>
    %120 = arith.divf %118, %119 : vector<4x16xf32>
    %121 = vector.extract_strided_slice %83 {offsets = [0, 16], sizes = [4, 16], strides = [1, 1]} : vector<4x48xf32> to vector<4x16xf32>
    %122 = vector.extract_strided_slice %77 {offsets = [0, 64], sizes = [4, 16], strides = [1, 1]} : vector<4x96xf32> to vector<4x16xf32>
    %123 = arith.addf %121, %122 : vector<4x16xf32>
    %124 = arith.negf %123 : vector<4x16xf32>
    %125 = math.exp %124 : vector<4x16xf32>
    %cst_27 = arith.constant 1.000000e+00 : f32
    %126 = vector.broadcast %cst_27 : f32 to vector<4x16xf32>
    %127 = arith.addf %126, %125 : vector<4x16xf32>
    %128 = arith.divf %126, %127 : vector<4x16xf32>
    %129 = vector.extract_strided_slice %83 {offsets = [0, 32], sizes = [4, 16], strides = [1, 1]} : vector<4x48xf32> to vector<4x16xf32>
    %130 = vector.extract_strided_slice %77 {offsets = [0, 80], sizes = [4, 16], strides = [1, 1]} : vector<4x96xf32> to vector<4x16xf32>
    %131 = vector.extract_strided_slice %4 {offsets = [0, 16], sizes = [1, 16], strides = [1, 1]} : vector<1x32xf32> to vector<1x16xf32>
    %132 = vector.broadcast %131 : vector<1x16xf32> to vector<4x16xf32>
    %133 = arith.addf %130, %132 : vector<4x16xf32>
    %134 = arith.mulf %120, %133 : vector<4x16xf32>
    %135 = arith.addf %129, %134 : vector<4x16xf32>
    %136 = math.tanh %135 : vector<4x16xf32>
    %cst_28 = arith.constant 1.000000e+00 : f32
    %137 = vector.broadcast %cst_28 : f32 to vector<4x16xf32>
    %138 = arith.subf %137, %128 : vector<4x16xf32>
    %139 = arith.mulf %138, %136 : vector<4x16xf32>
    %140 = arith.mulf %128, %74 : vector<4x16xf32>
    %141 = arith.addf %139, %140 : vector<4x16xf32>
    %c2_i32 = arith.constant 2 : i32
    %c3_i32_29 = arith.constant 3 : i32
    %142 = arith.subi %c3_i32_29, %c2_i32 : i32
    %143 = tpu.concatenate %112, %141 in 1 : vector<4x16xf32>, vector<4x16xf32> -> vector<4x32xf32>
    %cst_30 = arith.constant dense<0.000000e+00> : vector<4x96xf32>
    %144 = tpu.matmul %143, %3, %cst_30 {dimension_numbers = #tpu.dot_dimension_numbers<[1], [0], [0], [1], [0, 0, 1, 1], [], []>} : vector<4x32xf32>, vector<32x96xf32>, vector<4x96xf32> -> vector<4x96xf32>
    %145 = arith.index_cast %c2_i32 : i32 to index
    %c0_31 = arith.constant 0 : index
    %c0_32 = arith.constant 0 : index
    %146 = vector.load %arg1[%145, %c0_31, %c0_32] : memref<4x4x48xf32, #tpu.memory_space<vmem>>, vector<1x4x48xf32>
    %147 = vector.shape_cast %146 : vector<1x4x48xf32> to vector<4x48xf32>
    %148 = arith.index_cast %142 : i32 to index
    %c0_33 = arith.constant 0 : index
    %c0_34 = arith.constant 0 : index
    %149 = vector.load %arg2[%148, %c0_33, %c0_34] : memref<4x4x48xf32, #tpu.memory_space<vmem>>, vector<1x4x48xf32>
    %150 = vector.shape_cast %149 : vector<1x4x48xf32> to vector<4x48xf32>
    %151 = vector.extract_strided_slice %147 {offsets = [0, 0], sizes = [4, 16], strides = [1, 1]} : vector<4x48xf32> to vector<4x16xf32>
    %152 = vector.extract_strided_slice %144 {offsets = [0, 0], sizes = [4, 16], strides = [1, 1]} : vector<4x96xf32> to vector<4x16xf32>
    %153 = arith.addf %151, %152 : vector<4x16xf32>
    %154 = arith.negf %153 : vector<4x16xf32>
    %155 = math.exp %154 : vector<4x16xf32>
    %cst_35 = arith.constant 1.000000e+00 : f32
    %156 = vector.broadcast %cst_35 : f32 to vector<4x16xf32>
    %157 = arith.addf %156, %155 : vector<4x16xf32>
    %158 = arith.divf %156, %157 : vector<4x16xf32>
    %159 = vector.extract_strided_slice %147 {offsets = [0, 16], sizes = [4, 16], strides = [1, 1]} : vector<4x48xf32> to vector<4x16xf32>
    %160 = vector.extract_strided_slice %144 {offsets = [0, 16], sizes = [4, 16], strides = [1, 1]} : vector<4x96xf32> to vector<4x16xf32>
    %161 = arith.addf %159, %160 : vector<4x16xf32>
    %162 = arith.negf %161 : vector<4x16xf32>
    %163 = math.exp %162 : vector<4x16xf32>
    %cst_36 = arith.constant 1.000000e+00 : f32
    %164 = vector.broadcast %cst_36 : f32 to vector<4x16xf32>
    %165 = arith.addf %164, %163 : vector<4x16xf32>
    %166 = arith.divf %164, %165 : vector<4x16xf32>
    %167 = vector.extract_strided_slice %147 {offsets = [0, 32], sizes = [4, 16], strides = [1, 1]} : vector<4x48xf32> to vector<4x16xf32>
    %168 = vector.extract_strided_slice %144 {offsets = [0, 32], sizes = [4, 16], strides = [1, 1]} : vector<4x96xf32> to vector<4x16xf32>
    %169 = vector.extract_strided_slice %4 {offsets = [0, 0], sizes = [1, 16], strides = [1, 1]} : vector<1x32xf32> to vector<1x16xf32>
    %170 = vector.broadcast %169 : vector<1x16xf32> to vector<4x16xf32>
    %171 = arith.addf %168, %170 : vector<4x16xf32>
    %172 = arith.mulf %158, %171 : vector<4x16xf32>
    %173 = arith.addf %167, %172 : vector<4x16xf32>
    %174 = math.tanh %173 : vector<4x16xf32>
    %cst_37 = arith.constant 1.000000e+00 : f32
    %175 = vector.broadcast %cst_37 : f32 to vector<4x16xf32>
    %176 = arith.subf %175, %166 : vector<4x16xf32>
    %177 = arith.mulf %176, %174 : vector<4x16xf32>
    %178 = arith.mulf %166, %112 : vector<4x16xf32>
    %179 = arith.addf %177, %178 : vector<4x16xf32>
    %180 = vector.extract_strided_slice %150 {offsets = [0, 0], sizes = [4, 16], strides = [1, 1]} : vector<4x48xf32> to vector<4x16xf32>
    %181 = vector.extract_strided_slice %144 {offsets = [0, 48], sizes = [4, 16], strides = [1, 1]} : vector<4x96xf32> to vector<4x16xf32>
    %182 = arith.addf %180, %181 : vector<4x16xf32>
    %183 = arith.negf %182 : vector<4x16xf32>
    %184 = math.exp %183 : vector<4x16xf32>
    %cst_38 = arith.constant 1.000000e+00 : f32
    %185 = vector.broadcast %cst_38 : f32 to vector<4x16xf32>
    %186 = arith.addf %185, %184 : vector<4x16xf32>
    %187 = arith.divf %185, %186 : vector<4x16xf32>
    %188 = vector.extract_strided_slice %150 {offsets = [0, 16], sizes = [4, 16], strides = [1, 1]} : vector<4x48xf32> to vector<4x16xf32>
    %189 = vector.extract_strided_slice %144 {offsets = [0, 64], sizes = [4, 16], strides = [1, 1]} : vector<4x96xf32> to vector<4x16xf32>
    %190 = arith.addf %188, %189 : vector<4x16xf32>
    %191 = arith.negf %190 : vector<4x16xf32>
    %192 = math.exp %191 : vector<4x16xf32>
    %cst_39 = arith.constant 1.000000e+00 : f32
    %193 = vector.broadcast %cst_39 : f32 to vector<4x16xf32>
    %194 = arith.addf %193, %192 : vector<4x16xf32>
    %195 = arith.divf %193, %194 : vector<4x16xf32>
    %196 = vector.extract_strided_slice %150 {offsets = [0, 32], sizes = [4, 16], strides = [1, 1]} : vector<4x48xf32> to vector<4x16xf32>
    %197 = vector.extract_strided_slice %144 {offsets = [0, 80], sizes = [4, 16], strides = [1, 1]} : vector<4x96xf32> to vector<4x16xf32>
    %198 = vector.extract_strided_slice %4 {offsets = [0, 16], sizes = [1, 16], strides = [1, 1]} : vector<1x32xf32> to vector<1x16xf32>
    %199 = vector.broadcast %198 : vector<1x16xf32> to vector<4x16xf32>
    %200 = arith.addf %197, %199 : vector<4x16xf32>
    %201 = arith.mulf %187, %200 : vector<4x16xf32>
    %202 = arith.addf %196, %201 : vector<4x16xf32>
    %203 = math.tanh %202 : vector<4x16xf32>
    %cst_40 = arith.constant 1.000000e+00 : f32
    %204 = vector.broadcast %cst_40 : f32 to vector<4x16xf32>
    %205 = arith.subf %204, %195 : vector<4x16xf32>
    %206 = arith.mulf %205, %203 : vector<4x16xf32>
    %207 = arith.mulf %195, %141 : vector<4x16xf32>
    %208 = arith.addf %206, %207 : vector<4x16xf32>
    %c3_i32_41 = arith.constant 3 : i32
    %c3_i32_42 = arith.constant 3 : i32
    %209 = arith.subi %c3_i32_42, %c3_i32_41 : i32
    %210 = tpu.concatenate %179, %208 in 1 : vector<4x16xf32>, vector<4x16xf32> -> vector<4x32xf32>
    %cst_43 = arith.constant dense<0.000000e+00> : vector<4x96xf32>
    %211 = tpu.matmul %210, %3, %cst_43 {dimension_numbers = #tpu.dot_dimension_numbers<[1], [0], [0], [1], [0, 0, 1, 1], [], []>} : vector<4x32xf32>, vector<32x96xf32>, vector<4x96xf32> -> vector<4x96xf32>
    %212 = arith.index_cast %c3_i32_41 : i32 to index
    %c0_44 = arith.constant 0 : index
    %c0_45 = arith.constant 0 : index
    %213 = vector.load %arg1[%212, %c0_44, %c0_45] : memref<4x4x48xf32, #tpu.memory_space<vmem>>, vector<1x4x48xf32>
    %214 = vector.shape_cast %213 : vector<1x4x48xf32> to vector<4x48xf32>
    %215 = arith.index_cast %209 : i32 to index
    %c0_46 = arith.constant 0 : index
    %c0_47 = arith.constant 0 : index
    %216 = vector.load %arg2[%215, %c0_46, %c0_47] : memref<4x4x48xf32, #tpu.memory_space<vmem>>, vector<1x4x48xf32>
    %217 = vector.shape_cast %216 : vector<1x4x48xf32> to vector<4x48xf32>
    %218 = vector.extract_strided_slice %214 {offsets = [0, 0], sizes = [4, 16], strides = [1, 1]} : vector<4x48xf32> to vector<4x16xf32>
    %219 = vector.extract_strided_slice %211 {offsets = [0, 0], sizes = [4, 16], strides = [1, 1]} : vector<4x96xf32> to vector<4x16xf32>
    %220 = arith.addf %218, %219 : vector<4x16xf32>
    %221 = arith.negf %220 : vector<4x16xf32>
    %222 = math.exp %221 : vector<4x16xf32>
    %cst_48 = arith.constant 1.000000e+00 : f32
    %223 = vector.broadcast %cst_48 : f32 to vector<4x16xf32>
    %224 = arith.addf %223, %222 : vector<4x16xf32>
    %225 = arith.divf %223, %224 : vector<4x16xf32>
    %226 = vector.extract_strided_slice %214 {offsets = [0, 16], sizes = [4, 16], strides = [1, 1]} : vector<4x48xf32> to vector<4x16xf32>
    %227 = vector.extract_strided_slice %211 {offsets = [0, 16], sizes = [4, 16], strides = [1, 1]} : vector<4x96xf32> to vector<4x16xf32>
    %228 = arith.addf %226, %227 : vector<4x16xf32>
    %229 = arith.negf %228 : vector<4x16xf32>
    %230 = math.exp %229 : vector<4x16xf32>
    %cst_49 = arith.constant 1.000000e+00 : f32
    %231 = vector.broadcast %cst_49 : f32 to vector<4x16xf32>
    %232 = arith.addf %231, %230 : vector<4x16xf32>
    %233 = arith.divf %231, %232 : vector<4x16xf32>
    %234 = vector.extract_strided_slice %214 {offsets = [0, 32], sizes = [4, 16], strides = [1, 1]} : vector<4x48xf32> to vector<4x16xf32>
    %235 = vector.extract_strided_slice %211 {offsets = [0, 32], sizes = [4, 16], strides = [1, 1]} : vector<4x96xf32> to vector<4x16xf32>
    %236 = vector.extract_strided_slice %4 {offsets = [0, 0], sizes = [1, 16], strides = [1, 1]} : vector<1x32xf32> to vector<1x16xf32>
    %237 = vector.broadcast %236 : vector<1x16xf32> to vector<4x16xf32>
    %238 = arith.addf %235, %237 : vector<4x16xf32>
    %239 = arith.mulf %225, %238 : vector<4x16xf32>
    %240 = arith.addf %234, %239 : vector<4x16xf32>
    %241 = math.tanh %240 : vector<4x16xf32>
    %cst_50 = arith.constant 1.000000e+00 : f32
    %242 = vector.broadcast %cst_50 : f32 to vector<4x16xf32>
    %243 = arith.subf %242, %233 : vector<4x16xf32>
    %244 = arith.mulf %243, %241 : vector<4x16xf32>
    %245 = arith.mulf %233, %179 : vector<4x16xf32>
    %246 = arith.addf %244, %245 : vector<4x16xf32>
    %247 = vector.extract_strided_slice %217 {offsets = [0, 0], sizes = [4, 16], strides = [1, 1]} : vector<4x48xf32> to vector<4x16xf32>
    %248 = vector.extract_strided_slice %211 {offsets = [0, 48], sizes = [4, 16], strides = [1, 1]} : vector<4x96xf32> to vector<4x16xf32>
    %249 = arith.addf %247, %248 : vector<4x16xf32>
    %250 = arith.negf %249 : vector<4x16xf32>
    %251 = math.exp %250 : vector<4x16xf32>
    %cst_51 = arith.constant 1.000000e+00 : f32
    %252 = vector.broadcast %cst_51 : f32 to vector<4x16xf32>
    %253 = arith.addf %252, %251 : vector<4x16xf32>
    %254 = arith.divf %252, %253 : vector<4x16xf32>
    %255 = vector.extract_strided_slice %217 {offsets = [0, 16], sizes = [4, 16], strides = [1, 1]} : vector<4x48xf32> to vector<4x16xf32>
    %256 = vector.extract_strided_slice %211 {offsets = [0, 64], sizes = [4, 16], strides = [1, 1]} : vector<4x96xf32> to vector<4x16xf32>
    %257 = arith.addf %255, %256 : vector<4x16xf32>
    %258 = arith.negf %257 : vector<4x16xf32>
    %259 = math.exp %258 : vector<4x16xf32>
    %cst_52 = arith.constant 1.000000e+00 : f32
    %260 = vector.broadcast %cst_52 : f32 to vector<4x16xf32>
    %261 = arith.addf %260, %259 : vector<4x16xf32>
    %262 = arith.divf %260, %261 : vector<4x16xf32>
    %263 = vector.extract_strided_slice %217 {offsets = [0, 32], sizes = [4, 16], strides = [1, 1]} : vector<4x48xf32> to vector<4x16xf32>
    %264 = vector.extract_strided_slice %211 {offsets = [0, 80], sizes = [4, 16], strides = [1, 1]} : vector<4x96xf32> to vector<4x16xf32>
    %265 = vector.extract_strided_slice %4 {offsets = [0, 16], sizes = [1, 16], strides = [1, 1]} : vector<1x32xf32> to vector<1x16xf32>
    %266 = vector.broadcast %265 : vector<1x16xf32> to vector<4x16xf32>
    %267 = arith.addf %264, %266 : vector<4x16xf32>
    %268 = arith.mulf %254, %267 : vector<4x16xf32>
    %269 = arith.addf %263, %268 : vector<4x16xf32>
    %270 = math.tanh %269 : vector<4x16xf32>
    %cst_53 = arith.constant 1.000000e+00 : f32
    %271 = vector.broadcast %cst_53 : f32 to vector<4x16xf32>
    %272 = arith.subf %271, %262 : vector<4x16xf32>
    %273 = arith.mulf %272, %270 : vector<4x16xf32>
    %274 = arith.mulf %262, %208 : vector<4x16xf32>
    %275 = arith.addf %273, %274 : vector<4x16xf32>
    %c4_i32 = arith.constant 4 : i32
    %276 = tpu.concatenate %246, %275 in 1 : vector<4x16xf32>, vector<4x16xf32> -> vector<4x32xf32>
    %c0_54 = arith.constant 0 : index
    %c0_55 = arith.constant 0 : index
    %277 = vector.load %arg6[%c0_54, %c0_55] : memref<4x32xf32, #tpu.memory_space<vmem>>, vector<4x32xf32>
    tpu.vector_store %arg6[%c0_54, %c0_55], %276 {strides = array<i32>} : memref<4x32xf32, #tpu.memory_space<vmem>>, vector<4x32xf32>,
    %c1_i32_56 = arith.constant 1 : i32
    %278 = arith.cmpi eq, %arg0, %c1_i32_56 : i32
    %279 = arith.extui %278 : i1 to i32
    %c0_i32_57 = arith.constant 0 : i32
    %280 = arith.cmpi ne, %279, %c0_i32_57 : i32
    scf.if %280 {
      %c0_58 = arith.constant 0 : index
      %c0_59 = arith.constant 0 : index
      %c0_60 = arith.constant 0 : index
      %281 = vector.load %arg5[%c0_58, %c0_59, %c0_60] : memref<2x4x16xf32, #tpu.memory_space<vmem>>, vector<1x4x16xf32>
      %282 = vector.shape_cast %281 : vector<1x4x16xf32> to vector<4x16xf32>
      %283 = vector.shape_cast %246 : vector<4x16xf32> to vector<1x4x16xf32>
      tpu.vector_store %arg5[%c0_58, %c0_59, %c0_60], %283 {strides = array<i32>} : memref<2x4x16xf32, #tpu.memory_space<vmem>>, vector<1x4x16xf32>,
      %c1 = arith.constant 1 : index
      %c0_61 = arith.constant 0 : index
      %c0_62 = arith.constant 0 : index
      %284 = vector.load %arg5[%c1, %c0_61, %c0_62] : memref<2x4x16xf32, #tpu.memory_space<vmem>>, vector<1x4x16xf32>
      %285 = vector.shape_cast %284 : vector<1x4x16xf32> to vector<4x16xf32>
      %286 = vector.shape_cast %275 : vector<4x16xf32> to vector<1x4x16xf32>
      tpu.vector_store %arg5[%c1, %c0_61, %c0_62], %286 {strides = array<i32>} : memref<2x4x16xf32, #tpu.memory_space<vmem>>, vector<1x4x16xf32>,
    } else {
    }
    return
  }
  func.func @transform_0(%arg0: i32) -> (i32, i32, i32) {
    %c0_i32 = arith.constant 0 : i32
    %c0_i32_0 = arith.constant 0 : i32
    %c0_i32_1 = arith.constant 0 : i32
    return %arg0, %c0_i32, %c0_i32_0 : i32, i32, i32
  }
  func.func @transform_1(%arg0: i32) -> (i32, i32, i32) {
    %c1_i32 = arith.constant 1 : i32
    %0 = arith.subi %c1_i32, %arg0 : i32
    %c0_i32 = arith.constant 0 : i32
    %c0_i32_0 = arith.constant 0 : i32
    %c0_i32_1 = arith.constant 0 : i32
    return %0, %c0_i32, %c0_i32_0 : i32, i32, i32
  }
  func.func @transform_2(%arg0: i32) -> (i32, i32) {
    %c0_i32 = arith.constant 0 : i32
    %c0_i32_0 = arith.constant 0 : i32
    %c0_i32_1 = arith.constant 0 : i32
    return %c0_i32, %c0_i32_0 : i32, i32
  }
  func.func @transform_3(%arg0: i32) -> (i32, i32) {
    %c0_i32 = arith.constant 0 : i32
    %c0_i32_0 = arith.constant 0 : i32
    %c0_i32_1 = arith.constant 0 : i32
    return %c0_i32, %c0_i32_0 : i32, i32
  }
  func.func @transform_4(%arg0: i32) -> (i32, i32, i32) {
    %c0_i32 = arith.constant 0 : i32
    %c0_i32_0 = arith.constant 0 : i32
    %c0_i32_1 = arith.constant 0 : i32
    %c0_i32_2 = arith.constant 0 : i32
    return %c0_i32, %c0_i32_0, %c0_i32_1 : i32, i32, i32
  }
}

</mosaic_0001>

<llo_original>
// kernel: bert_gru_sentiment.2
$region0: #{bert_gru_sentiment.2}
  #allocation0 [shape = 'u32[]', space=smem, size = 0x4, offset = 0x4, fixed_abs, tag = 'smem constant byte address 0x4 - core index']
  #allocation1 [shape = 'u32[144,128]{1,0:T(1,128)}', space=vmem, size = 0x12000, scoped, tag = 'internal scratch']
  #allocation2 [shape = 'f32[4,32]{1,0:T(4,128)}', space=vmem, size = 0x800, scoped, tag = 'scratch operand']
  %s0 = inlined_call_operand.vmem [shape: f32[8,4,48], index: 0, kind: input, shape index: {}]
  %s1 = inlined_call_operand.vmem [shape: f32[8,4,48], index: 1, kind: input, shape index: {}]
  %s2 = inlined_call_operand.vmem [shape: f32[32,96], index: 2, kind: input, shape index: {}]
  %s3 = inlined_call_operand.vmem [shape: f32[1,32], index: 3, kind: input, shape index: {}]
  %s4 = inlined_call_operand.vmem [shape: f32[8,4,16], index: 4, kind: output, shape index: {0}]
  %s5 = inlined_call_operand.vmem [shape: f32[8,4,16], index: 5, kind: output, shape index: {1}]
  %s6 = inlined_call_operand.vmem [shape: f32[2,4,16], index: 6, kind: output, shape index: {2}]
  %7 = xla_tuple %s4, %s5, %s6
  %s8 = sld [smem:[#allocation0]]
  $region73: #{bert_gru_sentiment.2} parent=0
    _
  %s10 = ssub.s32 1, %s8
  %s11 = scalar_select 0, %s10, %s8
  loop: start=0, step=1, limit=4
  $region2: #{bert_gru_sentiment.2} parent=0 // loop_pre_header
    _
  $region3: #{bert_gru_sentiment.2} parent=0 // loop_header
    %s13 = sphi 0, %s17
    %p14 = scmp.ge.s32.totalorder %s13, 4
    %s23 = sphi 0, %s25
    %s26 = sphi 0, %s23
    %s27 = sphi 0, %s26
    %s43 = sphi 0, %s27
    %s51 = sphi 0, %s53
    %s54 = sphi 0, %s51
    %s55 = sphi 0, %s54
    %s71 = sphi 0, %s55
    %s75 = sphi 0, %s75
    %s77 = sphi 0, %s75
    %s78 = sphi 0, %s77
    %s92 = sphi 0, %s78
    %s96 = sphi 0, %s96
    %s98 = sphi 0, %s96
    %s99 = sphi 0, %s98
    %s113 = sphi 0, %s99
    %s119 = sphi 0, %s121
    %s122 = sphi 0, %s119
    %s123 = sphi 0, %s122
    %s139 = sphi 0, %s123
    %s147 = sphi 0, %s149
    %s150 = sphi 0, %s147
    %s151 = sphi 0, %s150
    %s167 = sphi 0, %s151
    %s171 = sphi 0, %s171
    %s173 = sphi 0, %s171
    %s174 = sphi 0, %s173
    %s188 = sphi 0, %s174
  $region4: #{bert_gru_sentiment.2} parent=0 // loop_header_branch
    %16 = sbr.rel (%p14) target = $region8
  $region5: #{bert_gru_sentiment.2} parent=0 // loop_body
    %s18 = ssub.s32 %s13, 1
    %s19 = ssub.s32 %s13, 2
    %s20 = sadd.s32 %s13, 1
    %s21 = ssub.s32 %s13, %s20
    %p22 = scmp.eq.s32.totalorder %s21, 0
    %s24 = sadd.s32 %s23, 1
    %s25 = scalar_select %p22, %s23, %s24
    %p28 = pneg %p22
    %p29 = scmp.eq.s32.totalorder %s13, 1
    %p30 = por %p28, %p29
    %p31 = scmp.ne.s32.totalorder %s23, %s26
    %p32 = scmp.eq.s32.totalorder %s13, 0
    %p33 = por %p31, %p32
    %p34 = scmp.ne.s32.totalorder %s23, %s26
    %p35 = scmp.eq.s32.totalorder %s18, 1
    %p36 = por %p34, %p35
    %p37 = scmp.ne.s32.totalorder %s26, %s27
    %p38 = scmp.eq.s32.totalorder %s18, 0
    %p39 = por %p37, %p38
    %p40 = scmp.ne.s32.totalorder %s26, %s27
    %p41 = scmp.eq.s32.totalorder %s19, 1
    %p42 = por %p40, %p41
    %p44 = scmp.ne.s32.totalorder %s27, %s43
    %p45 = scmp.eq.s32.totalorder %s19, 0
    %p46 = por %p44, %p45
    %s47 = ssub.s32 1, %s13
    %s48 = ssub.s32 1, %s20
    %s49 = ssub.s32 %s47, %s48
    %p50 = scmp.eq.s32.totalorder %s49, 0
    %s52 = sadd.s32 %s51, 1
    %s53 = scalar_select %p50, %s51, %s52
    %p56 = pneg %p50
    %p57 = scmp.eq.s32.totalorder %s13, 1
    %p58 = por %p56, %p57
    %p59 = scmp.ne.s32.totalorder %s51, %s54
    %p60 = scmp.eq.s32.totalorder %s13, 0
    %p61 = por %p59, %p60
    %p62 = scmp.ne.s32.totalorder %s51, %s54
    %p63 = scmp.eq.s32.totalorder %s18, 1
    %p64 = por %p62, %p63
    %p65 = scmp.ne.s32.totalorder %s54, %s55
    %p66 = scmp.eq.s32.totalorder %s18, 0
    %p67 = por %p65, %p66
    %p68 = scmp.ne.s32.totalorder %s54, %s55
    %p69 = scmp.eq.s32.totalorder %s19, 1
    %p70 = por %p68, %p69
    %p72 = scmp.ne.s32.totalorder %s55, %s71
    %p73 = scmp.eq.s32.totalorder %s19, 0
    %p74 = por %p72, %p73
    %s76 = sadd.s32 %s75, 1
    %p79 = scmp.eq.s32.totalorder %s13, 1
    %p80 = scmp.ne.s32.totalorder %s75, %s77
    %p81 = scmp.eq.s32.totalorder %s13, 0
    %p82 = por %p80, %p81
    %p83 = scmp.ne.s32.totalorder %s75, %s77
    %p84 = scmp.eq.s32.totalorder %s18, 1
    %p85 = por %p83, %p84
    %p86 = scmp.ne.s32.totalorder %s77, %s78
    %p87 = scmp.eq.s32.totalorder %s18, 0
    %p88 = por %p86, %p87
    %p89 = scmp.ne.s32.totalorder %s77, %s78
    %p90 = scmp.eq.s32.totalorder %s19, 1
    %p91 = por %p89, %p90
    %p93 = scmp.ne.s32.totalorder %s78, %s92
    %p94 = scmp.eq.s32.totalorder %s19, 0
    %p95 = por %p93, %p94
    %s97 = sadd.s32 %s96, 1
    %p100 = scmp.eq.s32.totalorder %s13, 1
    %p101 = scmp.ne.s32.totalorder %s96, %s98
    %p102 = scmp.eq.s32.totalorder %s13, 0
    %p103 = por %p101, %p102
    %p104 = scmp.ne.s32.totalorder %s96, %s98
    %p105 = scmp.eq.s32.totalorder %s18, 1
    %p106 = por %p104, %p105
    %p107 = scmp.ne.s32.totalorder %s98, %s99
    %p108 = scmp.eq.s32.totalorder %s18, 0
    %p109 = por %p107, %p108
    %p110 = scmp.ne.s32.totalorder %s98, %s99
    %p111 = scmp.eq.s32.totalorder %s19, 1
    %p112 = por %p110, %p111
    %p114 = scmp.ne.s32.totalorder %s99, %s113
    %p115 = scmp.eq.s32.totalorder %s19, 0
    %p116 = por %p114, %p115
    %s117 = ssub.s32 %s13, %s20
    %p118 = scmp.eq.s32.totalorder %s117, 0
    %s120 = sadd.s32 %s119, 1
    %s121 = scalar_select %p118, %s119, %s120
    %p124 = pneg %p118
    %p125 = scmp.eq.s32.totalorder %s13, 1
    %p126 = por %p124, %p125
    %p127 = scmp.ne.s32.totalorder %s119, %s122
    %p128 = scmp.eq.s32.totalorder %s13, 0
    %p129 = por %p127, %p128
    %p130 = scmp.ne.s32.totalorder %s119, %s122
    %p131 = scmp.eq.s32.totalorder %s18, 1
    %p132 = por %p130, %p131
    %p133 = scmp.ne.s32.totalorder %s122, %s123
    %p134 = scmp.eq.s32.totalorder %s18, 0
    %p135 = por %p133, %p134
    %p136 = scmp.ne.s32.totalorder %s122, %s123
    %p137 = scmp.eq.s32.totalorder %s19, 1
    %p138 = por %p136, %p137
    %p140 = scmp.ne.s32.totalorder %s123, %s139
    %p141 = scmp.eq.s32.totalorder %s19, 0
    %p142 = por %p140, %p141
    %s143 = ssub.s32 1, %s13
    %s144 = ssub.s32 1, %s20
    %s145 = ssub.s32 %s143, %s144
    %p146 = scmp.eq.s32.totalorder %s145, 0
    %s148 = sadd.s32 %s147, 1
    %s149 = scalar_select %p146, %s147, %s148
    %p152 = pneg %p146
    %p153 = scmp.eq.s32.totalorder %s13, 1
    %p154 = por %p152, %p153
    %p155 = scmp.ne.s32.totalorder %s147, %s150
    %p156 = scmp.eq.s32.totalorder %s13, 0
    %p157 = por %p155, %p156
    %p158 = scmp.ne.s32.totalorder %s147, %s150
    %p159 = scmp.eq.s32.totalorder %s18, 1
    %p160 = por %p158, %p159
    %p161 = scmp.ne.s32.totalorder %s150, %s151
    %p162 = scmp.eq.s32.totalorder %s18, 0
    %p163 = por %p161, %p162
    %p164 = scmp.ne.s32.totalorder %s150, %s151
    %p165 = scmp.eq.s32.totalorder %s19, 1
    %p166 = por %p164, %p165
    %p168 = scmp.ne.s32.totalorder %s151, %s167
    %p169 = scmp.eq.s32.totalorder %s19, 0
    %p170 = por %p168, %p169
    %s172 = sadd.s32 %s171, 1
    %p175 = scmp.eq.s32.totalorder %s13, 1
    %p176 = scmp.ne.s32.totalorder %s171, %s173
    %p177 = scmp.eq.s32.totalorder %s13, 0
    %p178 = por %p176, %p177
    %p179 = scmp.ne.s32.totalorder %s171, %s173
    %p180 = scmp.eq.s32.totalorder %s18, 1
    %p181 = por %p179, %p180
    %p182 = scmp.ne.s32.totalorder %s173, %s174
    %p183 = scmp.eq.s32.totalorder %s18, 0
    %p184 = por %p182, %p183
    %p185 = scmp.ne.s32.totalorder %s173, %s174
    %p186 = scmp.eq.s32.totalorder %s19, 1
    %p187 = por %p185, %p186
    %p189 = scmp.ne.s32.totalorder %s174, %s188
    %p190 = scmp.eq.s32.totalorder %s19, 0
    %p191 = por %p189, %p190
    %p192 = scmp.le.s32.totalorder 1, %s13
    %p193 = scmp.lt.s32.totalorder %s13, 3
    %p194 = pnand %p192, %p193
    %p195 = pneg %p194
    // Predicated region
    $region9: #{bert_gru_sentiment.2} parent=5 // pred_check
      _
    $region10: #{bert_gru_sentiment.2} parent=5 // pred_check_branch
      %197 = sbr.rel (%p194) target = $region12
    $region11: #{bert_gru_sentiment.2} parent=5 // pred_region
      %s198 = ssub.s32 %s13, 1
      // Predicated region
      $region13: #{bert_gru_sentiment.2} parent=11 // pred_check
        %p199 = pneg %p88
      $region14: #{bert_gru_sentiment.2} parent=11 // pred_check_branch
        %201 = sbr.rel (%p199) target = $region16
      $region15: #{bert_gru_sentiment.2} parent=11 // pred_region
        _
      $region16: #{bert_gru_sentiment.2} parent=11 // pred_fallthru
        _
      // Predicated region
      $region17: #{bert_gru_sentiment.2} parent=11 // pred_check
        %p202 = pneg %p109
      $region18: #{bert_gru_sentiment.2} parent=11 // pred_check_branch
        %204 = sbr.rel (%p202) target = $region20
      $region19: #{bert_gru_sentiment.2} parent=11 // pred_region
        _
      $region20: #{bert_gru_sentiment.2} parent=11 // pred_fallthru
        _
    $region12: #{bert_gru_sentiment.2} parent=5 // pred_fallthru
      _
    %p205 = scmp.lt.s32.totalorder %s13, 2
    // Predicated region
    $region21: #{bert_gru_sentiment.2} parent=5 // pred_check
      %p206 = pneg %p205
    $region22: #{bert_gru_sentiment.2} parent=5 // pred_check_branch
      %208 = sbr.rel (%p206) target = $region24
    $region23: #{bert_gru_sentiment.2} parent=5 // pred_region
      // Predicated region
      $region25: #{bert_gru_sentiment.2} parent=23 // pred_check
        %p209 = pneg %p33
      $region26: #{bert_gru_sentiment.2} parent=23 // pred_check_branch
        %211 = sbr.rel (%p209) target = $region28
      $region27: #{bert_gru_sentiment.2} parent=23 // pred_region
        %s212 = smul.u32 4, %s13
        %p213 = scmp.lt.s32.totalorder %s212, 7
        %s214 = scalar_select %p213, %s212, 7
        %s215 = smul.addr %s214, 4
        %s216 = scalar_lea.vmem %s0, %s215
        %s217 = smul.u32 4, %s13
      $region28: #{bert_gru_sentiment.2} parent=23 // pred_fallthru
        _
      // Predicated region
      $region29: #{bert_gru_sentiment.2} parent=23 // pred_check
        %p218 = pneg %p61
      $region30: #{bert_gru_sentiment.2} parent=23 // pred_check_branch
        %220 = sbr.rel (%p218) target = $region32
      $region31: #{bert_gru_sentiment.2} parent=23 // pred_region
        %s221 = ssub.s32 1, %s13
        %s222 = smul.u32 4, %s221
        %p223 = scmp.lt.s32.totalorder %s222, 7
        %s224 = scalar_select %p223, %s222, 7
        %s225 = smul.addr %s224, 4
        %s226 = scalar_lea.vmem %s1, %s225
        %s227 = ssub.s32 1, %s13
        %s228 = smul.u32 4, %s227
      $region32: #{bert_gru_sentiment.2} parent=23 // pred_fallthru
        _
    $region24: #{bert_gru_sentiment.2} parent=5 // pred_fallthru
      _
    %p229 = scmp.le.s32.totalorder 1, %s13
    %p230 = scmp.lt.s32.totalorder %s13, 3
    %p231 = pnand %p229, %p230
    %p232 = pneg %p231
    // Predicated region
    $region33: #{bert_gru_sentiment.2} parent=5 // pred_check
      _
    $region34: #{bert_gru_sentiment.2} parent=5 // pred_check_branch
      %234 = sbr.rel (%p231) target = $region36
    $region35: #{bert_gru_sentiment.2} parent=5 // pred_region
      %s235 = ssub.s32 %s13, 1
      %s236 = smul.u32 4, %s18
      %p237 = scmp.lt.s32.totalorder %s236, 7
      %s238 = scalar_select %p237, %s236, 7
      %s239 = smul.addr %s238, 4
      %s240 = scalar_lea.vmem %s0, %s239
      %p241 = pneg %p39
      %p242 = pneg %p36
      %s243 = ssub.s32 1, %s18
      %s244 = smul.u32 4, %s243
      %p245 = scmp.lt.s32.totalorder %s244, 7
      %s246 = scalar_select %p245, %s244, 7
      %s247 = smul.addr %s246, 4
      %s248 = scalar_lea.vmem %s1, %s247
      %p249 = pneg %p67
      %p250 = pneg %p64
      %p251 = pneg %p88
      %p252 = pneg %p85
      %p253 = pneg %p109
      %p254 = pneg %p106
      %p255 = pneg %p135
      %p256 = pneg %p132
      %s257 = smul.u32 4, %s18
      %p258 = scmp.lt.s32.totalorder %s257, 7
      %s259 = scalar_select %p258, %s257, 7
      %s260 = smul.addr %s259, 4
      %s261 = scalar_lea.vmem %s4, %s260
      %p262 = pneg %p163
      %p263 = pneg %p160
      %s264 = ssub.s32 1, %s18
      %s265 = smul.u32 4, %s264
      %p266 = scmp.lt.s32.totalorder %s265, 7
      %s267 = scalar_select %p266, %s265, 7
      %s268 = smul.addr %s267, 4
      %s269 = scalar_lea.vmem %s5, %s268
      %p270 = pneg %p184
      %p271 = pneg %p181
      %s272 = smul.u32 4, %s18
      %p273 = scmp.lt.s32.totalorder %s272, 7
      %s274 = scalar_select %p273, %s272, 7
      %s275 = smul.addr %s274, 4
      %s276 = scalar_lea.vmem %s0, %s275
      %s277 = smul.u32 4, %s18
      %s278 = ssub.s32 1, %s18
      %s279 = smul.u32 4, %s278
      %p280 = scmp.lt.s32.totalorder %s279, 7
      %s281 = scalar_select %p280, %s279, 7
      %s282 = smul.addr %s281, 4
      %s283 = scalar_lea.vmem %s1, %s282
      %s284 = ssub.s32 1, %s18
      %s285 = smul.u32 4, %s284
      %s286 = smul.u32 4, %s18
      %p287 = scmp.lt.s32.totalorder %s286, 7
      %s288 = scalar_select %p287, %s286, 7
      %s289 = smul.addr %s288, 4
      %s290 = scalar_lea.vmem %s4, %s289
      %s291 = smul.u32 4, %s18
      %s292 = ssub.s32 1, %s18
      %s293 = smul.u32 4, %s292
      %p294 = scmp.lt.s32.totalorder %s293, 7
      %s295 = scalar_select %p294, %s293, 7
      %s296 = smul.addr %s295, 4
      %s297 = scalar_lea.vmem %s5, %s296
      %s298 = ssub.s32 1, %s18
      %s299 = smul.u32 4, %s298
      %p300 = scmp.eq.s32.totalorder %s18, 0
      // Predicated region
      $region37: #{bert_gru_sentiment.2} parent=35 // pred_check
        %p301 = pneg %p300
      $region38: #{bert_gru_sentiment.2} parent=35 // pred_check_branch
        %303 = sbr.rel (%p301) target = $region40
      $region39: #{bert_gru_sentiment.2} parent=35 // pred_region
        %vm304 = vcmask 257024
        %305 = vst.msk [vmem:[#allocation2] sm:$0xf] %vm304, 0.0
      $region40: #{bert_gru_sentiment.2} parent=35 // pred_fallthru
        _
      %v306 = vld [vmem:[%s2] sm:$0xff]
      %v307 = vld [vmem:[%s2 + $0x8] sm:$0xff]
      %v308 = vld [vmem:[%s2 + $0x10] sm:$0xff]
      %v309 = vld [vmem:[%s2 + $0x18] sm:$0xff]
      %v310 = vld [vmem:[%s3] sm:$0x1]
      %v311 = vld [vmem:[#allocation2] sm:$0xf]
      %vm312 = vcmask 261120
      %v314 = vsel %vm312, %v311, 0
      %316 = vmatprep.subr.mxu0 0.0
      %317 = vmatpush1.msra.mxu0 %v306
      %318 = vmatprep.subr.mxu0 0.0
      %319 = vmatpush1.msra.mxu0 %v307
      %320 = vmatprep.subr.mxu0 0.0
      %321 = vmatpush1.msra.mxu0 %v308
      %322 = vmatprep.subr.mxu0 0.0
      %323 = vmatpush1.msra.mxu0 %v309
      %324 = vmatprep.subr.mxu0 0.0
      %325 = vmatpush1.msra.mxu0 0.0
      %326 = vmatprep.subr.mxu0 0.0
      %327 = vmatpush1.msra.mxu0 0.0
      %328 = vmatprep.subr.mxu0 0.0
      %329 = vmatpush1.msra.mxu0 0.0
      %330 = vmatprep.subr.mxu0 0.0
      %331 = vmatpush1.msra.mxu0 0.0
      %332 = vmatprep.subr.mxu0 0.0
      %333 = vmatpush1.msra.mxu0 0.0
      %334 = vmatprep.subr.mxu0 0.0
      %335 = vmatpush1.msra.mxu0 0.0
      %336 = vmatprep.subr.mxu0 0.0
      %337 = vmatpush1.msra.mxu0 0.0
      %338 = vmatprep.subr.mxu0 0.0
      %339 = vmatpush1.msra.mxu0 0.0
      %340 = vmatprep.subr.mxu0 0.0
      %341 = vmatpush1.msra.mxu0 0.0
      %342 = vmatprep.subr.mxu0 0.0
      %343 = vmatpush1.msra.mxu0 0.0
      %344 = vmatprep.subr.mxu0 0.0
      %345 = vmatpush1.msra.mxu0 0.0
      %346 = vmatprep.subr.mxu0 0.0
      %347 = vmatpush1.msra.mxu0 0.0
      %348 = vmatprep.subr.mxu0 0.0
      %349 = vmatpush1.msra.mxu0 0.0
      %350 = vmatprep.subr.mxu0 0.0
      %351 = vmatpush1.msra.mxu0 0.0
      %352 = vmatprep.subr.mxu0 0.0
      %353 = vmatpush1.msra.mxu0 0.0
      %354 = vmatprep.subr.mxu0 0.0
      %355 = vmatpush1.msra.mxu0 0.0
      %356 = vmatprep.subr.mxu0 0.0
      %357 = vmatpush1.msra.mxu0 0.0
      %358 = vmatprep.subr.mxu0 0.0
      %359 = vmatpush1.msra.mxu0 0.0
      %360 = vmatprep.subr.mxu0 0.0
      %361 = vmatpush1.msra.mxu0 0.0
      %362 = vmatprep.subr.mxu0 0.0
      %363 = vmatpush1.msra.mxu0 0.0
      %364 = vmatprep.subr.mxu0 0.0
      %365 = vmatpush1.msra.mxu0 0.0
      %366 = vmatprep.subr.mxu0 0.0
      %367 = vmatpush1.msra.mxu0 0.0
      %368 = vmatprep.subr.mxu0 0.0
      %369 = vmatpush1.msra.mxu0 0.0
      %370 = vmatprep.subr.mxu0 0.0
      %371 = vmatpush1.msra.mxu0 0.0
      %372 = vmatprep.subr.mxu0 0.0
      %373 = vmatpush1.msra.mxu0 0.0
      %374 = vmatprep.subr.mxu0 0.0
      %375 = vmatpush1.msra.mxu0 0.0
      %376 = vmatprep.subr.mxu0 0.0
      %377 = vmatpush1.msra.mxu0 0.0
      %378 = vmatprep.subr.mxu0 0.0
      %379 = vmatpush1.msra.mxu0 0.0
      %380 = vmatprep.mubr.f32.mxu0 0.0
      %381 = vmatmul.mubr.f32.gmra.mrb[0].mxu0 %v314
      %v382 = vpop.f32.mrb[0].mxu0
      %v383 = vadd.f32 0.0, %v382
      %v384 = vpop.f32.mrb[0].mxu0
      %385 = vdwg.mxu0
      %v386 = vld [vmem:[%s276] sm:$0xf]
      %s387 = scalar_lea.vmem %s283, 12
      %v388 = vld [vmem:[%s387] sm:$0xf]
      %v389 = vadd.f32 %v386, %v383
      %v390 = vxor.u32 %v389, 2147483648
      %v391 = vmul.f32 %v390, 1.442695
      %v392 = vpow.pop %v391
      %v393 = vadd.f32 %v392, 1.0
      %v394 = vrcp.pop %v393
      %v395 = vmul.f32 1.0, %v394
      %v397 = vlaneseq
      %v398 = vshrl.u32 %v397, 7
      %v399 = vsub.s32 0, %v398
      %v400 = vrot.slane %v310, %v399
      %401 = vrot.lane.b32.xlu0 %v400, 32
      %v402 = vpop.permute.xlu0 %401
      %v404 = vadd.f32 %v383, %v402
      %406 = vrot.lane.b32.xlu0 %v404, 96
      %v407 = vpop.permute.xlu0 %406
      %v409 = vmul.f32 %v395, %v407
      %411 = vrot.lane.b32.xlu0 %v409, 32
      %v412 = vpop.permute.xlu0 %411
      %v414 = vadd.f32 %v386, %v412
      %v415 = vtanh.pop %v414
      %v416 = vsub.f32 1.0, %v395
      %418 = vrot.lane.b32.xlu0 %v415, 112
      %v419 = vpop.permute.xlu0 %418
      %v421 = vmul.f32 %v416, %v419
      %422 = vrot.lane.b32.xlu0 %v311, 16
      %v423 = vpop.permute.xlu0 %422
      %v425 = vmul.f32 %v395, %v423
      %v426 = vadd.f32 %v421, %v425
      %428 = vrot.lane.b32.xlu0 %v383, 80
      %v429 = vpop.permute.xlu0 %428
      %v431 = vadd.f32 %v388, %v429
      %v432 = vxor.u32 %v431, 2147483648
      %v433 = vmul.f32 %v432, 1.442695
      %v434 = vpow.pop %v433
      %v435 = vadd.f32 %v434, 1.0
      %v436 = vrcp.pop %v435
      %v437 = vmul.f32 1.0, %v436
      %438 = vrot.lane.b32.xlu0 %v400, 64
      %v439 = vpop.permute.xlu0 %438
      %v441 = vadd.f32 %v383, %v439
      %443 = vrot.lane.b32.xlu0 %v441, 48
      %v444 = vpop.permute.xlu0 %443
      %v446 = vmul.f32 %v437, %v444
      %448 = vrot.lane.b32.xlu0 %v446, 32
      %v449 = vpop.permute.xlu0 %448
      %v451 = vadd.f32 %v388, %v449
      %v452 = vtanh.pop %v451
      %v453 = vsub.f32 1.0, %v437
      %455 = vrot.lane.b32.xlu0 %v452, 112
      %v456 = vpop.permute.xlu0 %455
      %v458 = vmul.f32 %v453, %v456
      %v459 = vmul.f32 %v437, %v311
      %v460 = vadd.f32 %v458, %v459
      %462 = vrot.lane.b32.xlu0 %v426, 112
      %v463 = vpop.permute.xlu0 %462
      %vm465 = vcmask 125952
      %466 = vst.msk [vmem:[%s290] sm:$0xf] %vm465, %v463
      %468 = vrot.lane.b32.xlu0 %v460, 112
      %v469 = vpop.permute.xlu0 %468
      %s471 = scalar_lea.vmem %s297, 12
      %472 = vst.msk [vmem:[%s471] sm:$0xf] %vm465, %v469
      %vm473 = vcmask 130048
      %v474 = vsel %vm473, %v463, %v460
      %v476 = vsel %vm312, %v474, 0
      %478 = vmatprep.subr.mxu0 0.0
      %479 = vmatpush1.msra.mxu0 %v306
      %480 = vmatprep.subr.mxu0 0.0
      %481 = vmatpush1.msra.mxu0 %v307
      %482 = vmatprep.subr.mxu0 0.0
      %483 = vmatpush1.msra.mxu0 %v308
      %484 = vmatprep.subr.mxu0 0.0
      %485 = vmatpush1.msra.mxu0 %v309
      %486 = vmatprep.subr.mxu0 0.0
      %487 = vmatpush1.msra.mxu0 0.0
      %488 = vmatprep.subr.mxu0 0.0
      %489 = vmatpush1.msra.mxu0 0.0
      %490 = vmatprep.subr.mxu0 0.0
      %491 = vmatpush1.msra.mxu0 0.0
      %492 = vmatprep.subr.mxu0 0.0
      %493 = vmatpush1.msra.mxu0 0.0
      %494 = vmatprep.subr.mxu0 0.0
      %495 = vmatpush1.msra.mxu0 0.0
      %496 = vmatprep.subr.mxu0 0.0
      %497 = vmatpush1.msra.mxu0 0.0
      %498 = vmatprep.subr.mxu0 0.0
      %499 = vmatpush1.msra.mxu0 0.0
      %500 = vmatprep.subr.mxu0 0.0
      %501 = vmatpush1.msra.mxu0 0.0
      %502 = vmatprep.subr.mxu0 0.0
      %503 = vmatpush1.msra.mxu0 0.0
      %504 = vmatprep.subr.mxu0 0.0
      %505 = vmatpush1.msra.mxu0 0.0
      %506 = vmatprep.subr.mxu0 0.0
      %507 = vmatpush1.msra.mxu0 0.0
      %508 = vmatprep.subr.mxu0 0.0
      %509 = vmatpush1.msra.mxu0 0.0
      %510 = vmatprep.subr.mxu0 0.0
      %511 = vmatpush1.msra.mxu0 0.0
      %512 = vmatprep.subr.mxu0 0.0
      %513 = vmatpush1.msra.mxu0 0.0
      %514 = vmatprep.subr.mxu0 0.0
      %515 = vmatpush1.msra.mxu0 0.0
      %516 = vmatprep.subr.mxu0 0.0
      %517 = vmatpush1.msra.mxu0 0.0
      %518 = vmatprep.subr.mxu0 0.0
      %519 = vmatpush1.msra.mxu0 0.0
      %520 = vmatprep.subr.mxu0 0.0
      %521 = vmatpush1.msra.mxu0 0.0
      %522 = vmatprep.subr.mxu0 0.0
      %523 = vmatpush1.msra.mxu0 0.0
      %524 = vmatprep.subr.mxu0 0.0
      %525 = vmatpush1.msra.mxu0 0.0
      %526 = vmatprep.subr.mxu0 0.0
      %527 = vmatpush1.msra.mxu0 0.0
      %528 = vmatprep.subr.mxu0 0.0
      %529 = vmatpush1.msra.mxu0 0.0
      %530 = vmatprep.subr.mxu0 0.0
      %531 = vmatpush1.msra.mxu0 0.0
      %532 = vmatprep.subr.mxu0 0.0
      %533 = vmatpush1.msra.mxu0 0.0
      %534 = vmatprep.subr.mxu0 0.0
      %535 = vmatpush1.msra.mxu0 0.0
      %536 = vmatprep.subr.mxu0 0.0
      %537 = vmatpush1.msra.mxu0 0.0
      %538 = vmatprep.subr.mxu0 0.0
      %539 = vmatpush1.msra.mxu0 0.0
      %540 = vmatprep.subr.mxu0 0.0
      %541 = vmatpush1.msra.mxu0 0.0
      %542 = vmatprep.mubr.f32.mxu0 0.0
      %543 = vmatmul.mubr.f32.gmra.mrb[0].mxu0 %v476
      %v544 = vpop.f32.mrb[0].mxu0
      %v545 = vadd.f32 0.0, %v544
      %v546 = vpop.f32.mrb[0].mxu0
      %547 = vdwg.mxu0
      %s548 = scalar_lea.vmem %s276, 4
      %v549 = vld [vmem:[%s548] sm:$0xf]
      %s550 = scalar_lea.vmem %s283, 8
      %v551 = vld [vmem:[%s550] sm:$0xf]
      %v552 = vadd.f32 %v549, %v545
      %v553 = vxor.u32 %v552, 2147483648
      %v554 = vmul.f32 %v553, 1.442695
      %v555 = vpow.pop %v554
      %v556 = vadd.f32 %v555, 1.0
      %v557 = vrcp.pop %v556
      %v558 = vmul.f32 1.0, %v557
      %v559 = vadd.f32 %v545, %v402
      %561 = vrot.lane.b32.xlu0 %v559, 96
      %v562 = vpop.permute.xlu0 %561
      %v564 = vmul.f32 %v558, %v562
      %566 = vrot.lane.b32.xlu0 %v564, 32
      %v567 = vpop.permute.xlu0 %566
      %v569 = vadd.f32 %v549, %v567
      %v570 = vtanh.pop %v569
      %v571 = vsub.f32 1.0, %v558
      %573 = vrot.lane.b32.xlu0 %v570, 112
      %v574 = vpop.permute.xlu0 %573
      %v576 = vmul.f32 %v571, %v574
      %v577 = vmul.f32 %v558, %v426
      %v578 = vadd.f32 %v576, %v577
      %580 = vrot.lane.b32.xlu0 %v545, 80
      %v581 = vpop.permute.xlu0 %580
      %v583 = vadd.f32 %v551, %v581
      %v584 = vxor.u32 %v583, 2147483648
      %v585 = vmul.f32 %v584, 1.442695
      %v586 = vpow.pop %v585
      %v587 = vadd.f32 %v586, 1.0
      %v588 = vrcp.pop %v587
      %v589 = vmul.f32 1.0, %v588
      %v590 = vadd.f32 %v545, %v439
      %592 = vrot.lane.b32.xlu0 %v590, 48
      %v593 = vpop.permute.xlu0 %592
      %v595 = vmul.f32 %v589, %v593
      %597 = vrot.lane.b32.xlu0 %v595, 32
      %v598 = vpop.permute.xlu0 %597
      %v600 = vadd.f32 %v551, %v598
      %v601 = vtanh.pop %v600
      %v602 = vsub.f32 1.0, %v589
      %604 = vrot.lane.b32.xlu0 %v601, 112
      %v605 = vpop.permute.xlu0 %604
      %v607 = vmul.f32 %v602, %v605
      %v608 = vmul.f32 %v589, %v460
      %v609 = vadd.f32 %v607, %v608
      %611 = vrot.lane.b32.xlu0 %v578, 112
      %v612 = vpop.permute.xlu0 %611
      %s614 = scalar_lea.vmem %s290, 4
      %615 = vst.msk [vmem:[%s614] sm:$0xf] %vm465, %v612
      %617 = vrot.lane.b32.xlu0 %v609, 112
      %v618 = vpop.permute.xlu0 %617
      %s620 = scalar_lea.vmem %s297, 8
      %621 = vst.msk [vmem:[%s620] sm:$0xf] %vm465, %v618
      %v622 = vsel %vm473, %v612, %v609
      %v624 = vsel %vm312, %v622, 0
      %626 = vmatprep.subr.mxu0 0.0
      %627 = vmatpush1.msra.mxu0 %v306
      %628 = vmatprep.subr.mxu0 0.0
      %629 = vmatpush1.msra.mxu0 %v307
      %630 = vmatprep.subr.mxu0 0.0
      %631 = vmatpush1.msra.mxu0 %v308
      %632 = vmatprep.subr.mxu0 0.0
      %633 = vmatpush1.msra.mxu0 %v309
      %634 = vmatprep.subr.mxu0 0.0
      %635 = vmatpush1.msra.mxu0 0.0
      %636 = vmatprep.subr.mxu0 0.0
      %637 = vmatpush1.msra.mxu0 0.0
      %638 = vmatprep.subr.mxu0 0.0
      %639 = vmatpush1.msra.mxu0 0.0
      %640 = vmatprep.subr.mxu0 0.0
      %641 = vmatpush1.msra.mxu0 0.0
      %642 = vmatprep.subr.mxu0 0.0
      %643 = vmatpush1.msra.mxu0 0.0
      %644 = vmatprep.subr.mxu0 0.0
      %645 = vmatpush1.msra.mxu0 0.0
      %646 = vmatprep.subr.mxu0 0.0
      %647 = vmatpush1.msra.mxu0 0.0
      %648 = vmatprep.subr.mxu0 0.0
      %649 = vmatpush1.msra.mxu0 0.0
      %650 = vmatprep.subr.mxu0 0.0
      %651 = vmatpush1.msra.mxu0 0.0
      %652 = vmatprep.subr.mxu0 0.0
      %653 = vmatpush1.msra.mxu0 0.0
      %654 = vmatprep.subr.mxu0 0.0
      %655 = vmatpush1.msra.mxu0 0.0
      %656 = vmatprep.subr.mxu0 0.0
      %657 = vmatpush1.msra.mxu0 0.0
      %658 = vmatprep.subr.mxu0 0.0
      %659 = vmatpush1.msra.mxu0 0.0
      %660 = vmatprep.subr.mxu0 0.0
      %661 = vmatpush1.msra.mxu0 0.0
      %662 = vmatprep.subr.mxu0 0.0
      %663 = vmatpush1.msra.mxu0 0.0
      %664 = vmatprep.subr.mxu0 0.0
      %665 = vmatpush1.msra.mxu0 0.0
      %666 = vmatprep.subr.mxu0 0.0
      %667 = vmatpush1.msra.mxu0 0.0
      %668 = vmatprep.subr.mxu0 0.0
      %669 = vmatpush1.msra.mxu0 0.0
      %670 = vmatprep.subr.mxu0 0.0
      %671 = vmatpush1.msra.mxu0 0.0
      %672 = vmatprep.subr.mxu0 0.0
      %673 = vmatpush1.msra.mxu0 0.0
      %674 = vmatprep.subr.mxu0 0.0
      %675 = vmatpush1.msra.mxu0 0.0
      %676 = vmatprep.subr.mxu0 0.0
      %677 = vmatpush1.msra.mxu0 0.0
      %678 = vmatprep.subr.mxu0 0.0
      %679 = vmatpush1.msra.mxu0 0.0
      %680 = vmatprep.subr.mxu0 0.0
      %681 = vmatpush1.msra.mxu0 0.0
      %682 = vmatprep.subr.mxu0 0.0
      %683 = vmatpush1.msra.mxu0 0.0
      %684 = vmatprep.subr.mxu0 0.0
      %685 = vmatpush1.msra.mxu0 0.0
      %686 = vmatprep.subr.mxu0 0.0
      %687 = vmatpush1.msra.mxu0 0.0
      %688 = vmatprep.subr.mxu0 0.0
      %689 = vmatpush1.msra.mxu0 0.0
      %690 = vmatprep.mubr.f32.mxu0 0.0
      %691 = vmatmul.mubr.f32.gmra.mrb[0].mxu0 %v624
      %v692 = vpop.f32.mrb[0].mxu0
      %v693 = vadd.f32 0.0, %v692
      %v694 = vpop.f32.mrb[0].mxu0
      %695 = vdwg.mxu0
      %s696 = scalar_lea.vmem %s276, 8
      %v697 = vld [vmem:[%s696] sm:$0xf]
      %s698 = scalar_lea.vmem %s283, 4
      %v699 = vld [vmem:[%s698] sm:$0xf]
      %v700 = vadd.f32 %v697, %v693
      %v701 = vxor.u32 %v700, 2147483648
      %v702 = vmul.f32 %v701, 1.442695
      %v703 = vpow.pop %v702
      %v704 = vadd.f32 %v703, 1.0
      %v705 = vrcp.pop %v704
      %v706 = vmul.f32 1.0, %v705
      %v707 = vadd.f32 %v693, %v402
      %709 = vrot.lane.b32.xlu0 %v707, 96
      %v710 = vpop.permute.xlu0 %709
      %v712 = vmul.f32 %v706, %v710
      %714 = vrot.lane.b32.xlu0 %v712, 32
      %v715 = vpop.permute.xlu0 %714
      %v717 = vadd.f32 %v697, %v715
      %v718 = vtanh.pop %v717
      %v719 = vsub.f32 1.0, %v706
      %721 = vrot.lane.b32.xlu0 %v718, 112
      %v722 = vpop.permute.xlu0 %721
      %v724 = vmul.f32 %v719, %v722
      %v725 = vmul.f32 %v706, %v578
      %v726 = vadd.f32 %v724, %v725
      %728 = vrot.lane.b32.xlu0 %v693, 80
      %v729 = vpop.permute.xlu0 %728
      %v731 = vadd.f32 %v699, %v729
      %v732 = vxor.u32 %v731, 2147483648
      %v733 = vmul.f32 %v732, 1.442695
      %v734 = vpow.pop %v733
      %v735 = vadd.f32 %v734, 1.0
      %v736 = vrcp.pop %v735
      %v737 = vmul.f32 1.0, %v736
      %v738 = vadd.f32 %v693, %v439
      %740 = vrot.lane.b32.xlu0 %v738, 48
      %v741 = vpop.permute.xlu0 %740
      %v743 = vmul.f32 %v737, %v741
      %745 = vrot.lane.b32.xlu0 %v743, 32
      %v746 = vpop.permute.xlu0 %745
      %v748 = vadd.f32 %v699, %v746
      %v749 = vtanh.pop %v748
      %v750 = vsub.f32 1.0, %v737
      %752 = vrot.lane.b32.xlu0 %v749, 112
      %v753 = vpop.permute.xlu0 %752
      %v755 = vmul.f32 %v750, %v753
      %v756 = vmul.f32 %v737, %v609
      %v757 = vadd.f32 %v755, %v756
      %759 = vrot.lane.b32.xlu0 %v726, 112
      %v760 = vpop.permute.xlu0 %759
      %s762 = scalar_lea.vmem %s290, 8
      %763 = vst.msk [vmem:[%s762] sm:$0xf] %vm465, %v760
      %765 = vrot.lane.b32.xlu0 %v757, 112
      %v766 = vpop.permute.xlu0 %765
      %s768 = scalar_lea.vmem %s297, 4
      %769 = vst.msk [vmem:[%s768] sm:$0xf] %vm465, %v766
      %v770 = vsel %vm473, %v760, %v757
      %v772 = vsel %vm312, %v770, 0
      %774 = vmatprep.subr.mxu0 0.0
      %775 = vmatpush1.msra.mxu0 %v306
      %776 = vmatprep.subr.mxu0 0.0
      %777 = vmatpush1.msra.mxu0 %v307
      %778 = vmatprep.subr.mxu0 0.0
      %779 = vmatpush1.msra.mxu0 %v308
      %780 = vmatprep.subr.mxu0 0.0
      %781 = vmatpush1.msra.mxu0 %v309
      %782 = vmatprep.subr.mxu0 0.0
      %783 = vmatpush1.msra.mxu0 0.0
      %784 = vmatprep.subr.mxu0 0.0
      %785 = vmatpush1.msra.mxu0 0.0
      %786 = vmatprep.subr.mxu0 0.0
      %787 = vmatpush1.msra.mxu0 0.0
      %788 = vmatprep.subr.mxu0 0.0
      %789 = vmatpush1.msra.mxu0 0.0
      %790 = vmatprep.subr.mxu0 0.0
      %791 = vmatpush1.msra.mxu0 0.0
      %792 = vmatprep.subr.mxu0 0.0
      %793 = vmatpush1.msra.mxu0 0.0
      %794 = vmatprep.subr.mxu0 0.0
      %795 = vmatpush1.msra.mxu0 0.0
      %796 = vmatprep.subr.mxu0 0.0
      %797 = vmatpush1.msra.mxu0 0.0
      %798 = vmatprep.subr.mxu0 0.0
      %799 = vmatpush1.msra.mxu0 0.0
      %800 = vmatprep.subr.mxu0 0.0
      %801 = vmatpush1.msra.mxu0 0.0
      %802 = vmatprep.subr.mxu0 0.0
      %803 = vmatpush1.msra.mxu0 0.0
      %804 = vmatprep.subr.mxu0 0.0
      %805 = vmatpush1.msra.mxu0 0.0
      %806 = vmatprep.subr.mxu0 0.0
      %807 = vmatpush1.msra.mxu0 0.0
      %808 = vmatprep.subr.mxu0 0.0
      %809 = vmatpush1.msra.mxu0 0.0
      %810 = vmatprep.subr.mxu0 0.0
      %811 = vmatpush1.msra.mxu0 0.0
      %812 = vmatprep.subr.mxu0 0.0
      %813 = vmatpush1.msra.mxu0 0.0
      %814 = vmatprep.subr.mxu0 0.0
      %815 = vmatpush1.msra.mxu0 0.0
      %816 = vmatprep.subr.mxu0 0.0
      %817 = vmatpush1.msra.mxu0 0.0
      %818 = vmatprep.subr.mxu0 0.0
      %819 = vmatpush1.msra.mxu0 0.0
      %820 = vmatprep.subr.mxu0 0.0
      %821 = vmatpush1.msra.mxu0 0.0
      %822 = vmatprep.subr.mxu0 0.0
      %823 = vmatpush1.msra.mxu0 0.0
      %824 = vmatprep.subr.mxu0 0.0
      %825 = vmatpush1.msra.mxu0 0.0
      %826 = vmatprep.subr.mxu0 0.0
      %827 = vmatpush1.msra.mxu0 0.0
      %828 = vmatprep.subr.mxu0 0.0
      %829 = vmatpush1.msra.mxu0 0.0
      %830 = vmatprep.subr.mxu0 0.0
      %831 = vmatpush1.msra.mxu0 0.0
      %832 = vmatprep.subr.mxu0 0.0
      %833 = vmatpush1.msra.mxu0 0.0
      %834 = vmatprep.subr.mxu0 0.0
      %835 = vmatpush1.msra.mxu0 0.0
      %836 = vmatprep.subr.mxu0 0.0
      %837 = vmatpush1.msra.mxu0 0.0
      %838 = vmatprep.mubr.f32.mxu0 0.0
      %839 = vmatmul.mubr.f32.gmra.mrb[0].mxu0 %v772
      %v840 = vpop.f32.mrb[0].mxu0
      %v841 = vadd.f32 0.0, %v840
      %v842 = vpop.f32.mrb[0].mxu0
      %843 = vdwg.mxu0
      %s844 = scalar_lea.vmem %s276, 12
      %v845 = vld [vmem:[%s844] sm:$0xf]
      %v846 = vld [vmem:[%s283] sm:$0xf]
      %v847 = vadd.f32 %v845, %v841
      %v848 = vxor.u32 %v847, 2147483648
      %v849 = vmul.f32 %v848, 1.442695
      %v850 = vpow.pop %v849
      %v851 = vadd.f32 %v850, 1.0
      %v852 = vrcp.pop %v851
      %v853 = vmul.f32 1.0, %v852
      %v854 = vadd.f32 %v841, %v402
      %856 = vrot.lane.b32.xlu0 %v854, 96
      %v857 = vpop.permute.xlu0 %856
      %v859 = vmul.f32 %v853, %v857
      %861 = vrot.lane.b32.xlu0 %v859, 32
      %v862 = vpop.permute.xlu0 %861
      %v864 = vadd.f32 %v845, %v862
      %v865 = vtanh.pop %v864
      %v866 = vsub.f32 1.0, %v853
      %868 = vrot.lane.b32.xlu0 %v865, 112
      %v869 = vpop.permute.xlu0 %868
      %v871 = vmul.f32 %v866, %v869
      %v872 = vmul.f32 %v853, %v726
      %v873 = vadd.f32 %v871, %v872
      %875 = vrot.lane.b32.xlu0 %v841, 80
      %v876 = vpop.permute.xlu0 %875
      %v878 = vadd.f32 %v846, %v876
      %v879 = vxor.u32 %v878, 2147483648
      %v880 = vmul.f32 %v879, 1.442695
      %v881 = vpow.pop %v880
      %v882 = vadd.f32 %v881, 1.0
      %v883 = vrcp.pop %v882
      %v884 = vmul.f32 1.0, %v883
      %v885 = vadd.f32 %v841, %v439
      %887 = vrot.lane.b32.xlu0 %v885, 48
      %v888 = vpop.permute.xlu0 %887
      %v890 = vmul.f32 %v884, %v888
      %892 = vrot.lane.b32.xlu0 %v890, 32
      %v893 = vpop.permute.xlu0 %892
      %v895 = vadd.f32 %v846, %v893
      %v896 = vtanh.pop %v895
      %v897 = vsub.f32 1.0, %v884
      %899 = vrot.lane.b32.xlu0 %v896, 112
      %v900 = vpop.permute.xlu0 %899
      %v902 = vmul.f32 %v897, %v900
      %v903 = vmul.f32 %v884, %v757
      %v904 = vadd.f32 %v902, %v903
      %906 = vrot.lane.b32.xlu0 %v873, 112
      %v907 = vpop.permute.xlu0 %906
      %s909 = scalar_lea.vmem %s290, 12
      %910 = vst.msk [vmem:[%s909] sm:$0xf] %vm465, %v907
      %912 = vrot.lane.b32.xlu0 %v904, 112
      %v913 = vpop.permute.xlu0 %912
      %915 = vst.msk [vmem:[%s297] sm:$0xf] %vm465, %v913
      %v916 = vsel %vm473, %v907, %v904
      %vm917 = vcmask 257024
      %918 = vst.msk [vmem:[#allocation2] sm:$0xf] %vm917, %v916
      %p919 = scmp.eq.s32.totalorder %s18, 1
      // Predicated region
      $region41: #{bert_gru_sentiment.2} parent=35 // pred_check
        %p920 = pneg %p919
      $region42: #{bert_gru_sentiment.2} parent=35 // pred_check_branch
        %922 = sbr.rel (%p920) target = $region44
      $region43: #{bert_gru_sentiment.2} parent=35 // pred_region
        %923 = vst.msk [vmem:[%s6] sm:$0xf] %vm465, %v907
        %s924 = scalar_lea.vmem %s6, 4
        %925 = vst.msk [vmem:[%s924] sm:$0xf] %vm465, %v913
      $region44: #{bert_gru_sentiment.2} parent=35 // pred_fallthru
        _
      %s926 = smul.u32 4, %s18
      %p927 = scmp.lt.s32.totalorder %s926, 7
      %s928 = scalar_select %p927, %s926, 7
      %s929 = smul.addr %s928, 4
      %s930 = scalar_lea.vmem %s4, %s929
      %s931 = ssub.s32 1, %s18
      %s932 = smul.u32 4, %s931
      %p933 = scmp.lt.s32.totalorder %s932, 7
      %s934 = scalar_select %p933, %s932, 7
      %s935 = smul.addr %s934, 4
      %s936 = scalar_lea.vmem %s5, %s935
      // Predicated region
      $region45: #{bert_gru_sentiment.2} parent=35 // pred_check
        %p937 = pneg %p132
      $region46: #{bert_gru_sentiment.2} parent=35 // pred_check_branch
        %939 = sbr.rel (%p937) target = $region48
      $region47: #{bert_gru_sentiment.2} parent=35 // pred_region
        %s940 = smul.u32 4, %s18
      $region48: #{bert_gru_sentiment.2} parent=35 // pred_fallthru
        _
      // Predicated region
      $region49: #{bert_gru_sentiment.2} parent=35 // pred_check
        %p941 = pneg %p160
      $region50: #{bert_gru_sentiment.2} parent=35 // pred_check_branch
        %943 = sbr.rel (%p941) target = $region52
      $region51: #{bert_gru_sentiment.2} parent=35 // pred_region
        %s944 = ssub.s32 1, %s18
        %s945 = smul.u32 4, %s944
      $region52: #{bert_gru_sentiment.2} parent=35 // pred_fallthru
        _
      // Predicated region
      $region53: #{bert_gru_sentiment.2} parent=35 // pred_check
        %p946 = pneg %p181
      $region54: #{bert_gru_sentiment.2} parent=35 // pred_check_branch
        %948 = sbr.rel (%p946) target = $region56
      $region55: #{bert_gru_sentiment.2} parent=35 // pred_region
        _
      $region56: #{bert_gru_sentiment.2} parent=35 // pred_fallthru
        _
      // Predicated region
      $region57: #{bert_gru_sentiment.2} parent=35 // pred_check
        %p949 = pneg %p181
      $region58: #{bert_gru_sentiment.2} parent=35 // pred_check_branch
        %951 = sbr.rel (%p949) target = $region60
      $region59: #{bert_gru_sentiment.2} parent=35 // pred_region
        _
      $region60: #{bert_gru_sentiment.2} parent=35 // pred_fallthru
        _
    $region36: #{bert_gru_sentiment.2} parent=5 // pred_fallthru
      _
    %p952 = scmp.le.s32.totalorder 2, %s13
    // Predicated region
    $region61: #{bert_gru_sentiment.2} parent=5 // pred_check
      %p953 = pneg %p952
    $region62: #{bert_gru_sentiment.2} parent=5 // pred_check_branch
      %955 = sbr.rel (%p953) target = $region64
    $region63: #{bert_gru_sentiment.2} parent=5 // pred_region
      %s956 = ssub.s32 %s13, 2
      // Predicated region
      $region65: #{bert_gru_sentiment.2} parent=63 // pred_check
        %p957 = pneg %p138
      $region66: #{bert_gru_sentiment.2} parent=63 // pred_check_branch
        %959 = sbr.rel (%p957) target = $region68
      $region67: #{bert_gru_sentiment.2} parent=63 // pred_region
        %s960 = smul.u32 4, %s19
        %p961 = scmp.lt.s32.totalorder %s960, 7
        %s962 = scalar_select %p961, %s960, 7
        %s963 = smul.addr %s962, 4
        %s964 = scalar_lea.vmem %s4, %s963
      $region68: #{bert_gru_sentiment.2} parent=63 // pred_fallthru
        _
      // Predicated region
      $region69: #{bert_gru_sentiment.2} parent=63 // pred_check
        %p965 = pneg %p166
      $region70: #{bert_gru_sentiment.2} parent=63 // pred_check_branch
        %967 = sbr.rel (%p965) target = $region72
      $region71: #{bert_gru_sentiment.2} parent=63 // pred_region
        %s968 = ssub.s32 1, %s19
        %s969 = smul.u32 4, %s968
        %p970 = scmp.lt.s32.totalorder %s969, 7
        %s971 = scalar_select %p970, %s969, 7
        %s972 = smul.addr %s971, 4
        %s973 = scalar_lea.vmem %s5, %s972
      $region72: #{bert_gru_sentiment.2} parent=63 // pred_fallthru
        _
    $region64: #{bert_gru_sentiment.2} parent=5 // pred_fallthru
      _
  $region6: #{bert_gru_sentiment.2} parent=0 // loop_footer
    %s17 = sadd.s32 1, %s13
  $region7: #{bert_gru_sentiment.2} parent=0 // loop_footer_branch
    %12 = sbr.rel target = $region3
  $region8: #{bert_gru_sentiment.2} parent=0 // loop_exit
    _

// kernel: bert_gru_sentiment.3
$region0: #{bert_gru_sentiment.3}
  #allocation0 [shape = 'u32[]', space=smem, size = 0x4, offset = 0x4, fixed_abs, tag = 'smem constant byte address 0x4 - core index']
  #allocation1 [shape = 'u32[144,128]{1,0:T(1,128)}', space=vmem, size = 0x12000, scoped, tag = 'internal scratch']
  #allocation2 [shape = 'f32[4,32]{1,0:T(4,128)}', space=vmem, size = 0x800, scoped, tag = 'scratch operand']
  %s0 = inlined_call_operand.vmem [shape: f32[8,4,48], index: 0, kind: input, shape index: {}]
  %s1 = inlined_call_operand.vmem [shape: f32[8,4,48], index: 1, kind: input, shape index: {}]
  %s2 = inlined_call_operand.vmem [shape: f32[32,96], index: 2, kind: input, shape index: {}]
  %s3 = inlined_call_operand.vmem [shape: f32[1,32], index: 3, kind: input, shape index: {}]
  %s4 = inlined_call_operand.vmem [shape: f32[2,4,16], index: 4, kind: output, shape index: {}]
  %s5 = sld [smem:[#allocation0]]
  $region57: #{bert_gru_sentiment.3} parent=0
    _
  %s7 = ssub.s32 1, %s5
  %s8 = scalar_select 0, %s7, %s5
  loop: start=0, step=1, limit=4
  $region2: #{bert_gru_sentiment.3} parent=0 // loop_pre_header
    _
  $region3: #{bert_gru_sentiment.3} parent=0 // loop_header
    %s10 = sphi 0, %s14
    %p11 = scmp.ge.s32.totalorder %s10, 4
    %s20 = sphi 0, %s22
    %s23 = sphi 0, %s20
    %s24 = sphi 0, %s23
    %s40 = sphi 0, %s24
    %s48 = sphi 0, %s50
    %s51 = sphi 0, %s48
    %s52 = sphi 0, %s51
    %s68 = sphi 0, %s52
    %s72 = sphi 0, %s72
    %s74 = sphi 0, %s72
    %s75 = sphi 0, %s74
    %s89 = sphi 0, %s75
    %s93 = sphi 0, %s93
    %s95 = sphi 0, %s93
    %s96 = sphi 0, %s95
    %s110 = sphi 0, %s96
    %s114 = sphi 0, %s114
    %s116 = sphi 0, %s114
    %s117 = sphi 0, %s116
    %s131 = sphi 0, %s117
  $region4: #{bert_gru_sentiment.3} parent=0 // loop_header_branch
    %13 = sbr.rel (%p11) target = $region8
  $region5: #{bert_gru_sentiment.3} parent=0 // loop_body
    %s15 = ssub.s32 %s10, 1
    %s16 = ssub.s32 %s10, 2
    %s17 = sadd.s32 %s10, 1
    %s18 = ssub.s32 %s10, %s17
    %p19 = scmp.eq.s32.totalorder %s18, 0
    %s21 = sadd.s32 %s20, 1
    %s22 = scalar_select %p19, %s20, %s21
    %p25 = pneg %p19
    %p26 = scmp.eq.s32.totalorder %s10, 1
    %p27 = por %p25, %p26
    %p28 = scmp.ne.s32.totalorder %s20, %s23
    %p29 = scmp.eq.s32.totalorder %s10, 0
    %p30 = por %p28, %p29
    %p31 = scmp.ne.s32.totalorder %s20, %s23
    %p32 = scmp.eq.s32.totalorder %s15, 1
    %p33 = por %p31, %p32
    %p34 = scmp.ne.s32.totalorder %s23, %s24
    %p35 = scmp.eq.s32.totalorder %s15, 0
    %p36 = por %p34, %p35
    %p37 = scmp.ne.s32.totalorder %s23, %s24
    %p38 = scmp.eq.s32.totalorder %s16, 1
    %p39 = por %p37, %p38
    %p41 = scmp.ne.s32.totalorder %s24, %s40
    %p42 = scmp.eq.s32.totalorder %s16, 0
    %p43 = por %p41, %p42
    %s44 = ssub.s32 1, %s10
    %s45 = ssub.s32 1, %s17
    %s46 = ssub.s32 %s44, %s45
    %p47 = scmp.eq.s32.totalorder %s46, 0
    %s49 = sadd.s32 %s48, 1
    %s50 = scalar_select %p47, %s48, %s49
    %p53 = pneg %p47
    %p54 = scmp.eq.s32.totalorder %s10, 1
    %p55 = por %p53, %p54
    %p56 = scmp.ne.s32.totalorder %s48, %s51
    %p57 = scmp.eq.s32.totalorder %s10, 0
    %p58 = por %p56, %p57
    %p59 = scmp.ne.s32.totalorder %s48, %s51
    %p60 = scmp.eq.s32.totalorder %s15, 1
    %p61 = por %p59, %p60
    %p62 = scmp.ne.s32.totalorder %s51, %s52
    %p63 = scmp.eq.s32.totalorder %s15, 0
    %p64 = por %p62, %p63
    %p65 = scmp.ne.s32.totalorder %s51, %s52
    %p66 = scmp.eq.s32.totalorder %s16, 1
    %p67 = por %p65, %p66
    %p69 = scmp.ne.s32.totalorder %s52, %s68
    %p70 = scmp.eq.s32.totalorder %s16, 0
    %p71 = por %p69, %p70
    %s73 = sadd.s32 %s72, 1
    %p76 = scmp.eq.s32.totalorder %s10, 1
    %p77 = scmp.ne.s32.totalorder %s72, %s74
    %p78 = scmp.eq.s32.totalorder %s10, 0
    %p79 = por %p77, %p78
    %p80 = scmp.ne.s32.totalorder %s72, %s74
    %p81 = scmp.eq.s32.totalorder %s15, 1
    %p82 = por %p80, %p81
    %p83 = scmp.ne.s32.totalorder %s74, %s75
    %p84 = scmp.eq.s32.totalorder %s15, 0
    %p85 = por %p83, %p84
    %p86 = scmp.ne.s32.totalorder %s74, %s75
    %p87 = scmp.eq.s32.totalorder %s16, 1
    %p88 = por %p86, %p87
    %p90 = scmp.ne.s32.totalorder %s75, %s89
    %p91 = scmp.eq.s32.totalorder %s16, 0
    %p92 = por %p90, %p91
    %s94 = sadd.s32 %s93, 1
    %p97 = scmp.eq.s32.totalorder %s10, 1
    %p98 = scmp.ne.s32.totalorder %s93, %s95
    %p99 = scmp.eq.s32.totalorder %s10, 0
    %p100 = por %p98, %p99
    %p101 = scmp.ne.s32.totalorder %s93, %s95
    %p102 = scmp.eq.s32.totalorder %s15, 1
    %p103 = por %p101, %p102
    %p104 = scmp.ne.s32.totalorder %s95, %s96
    %p105 = scmp.eq.s32.totalorder %s15, 0
    %p106 = por %p104, %p105
    %p107 = scmp.ne.s32.totalorder %s95, %s96
    %p108 = scmp.eq.s32.totalorder %s16, 1
    %p109 = por %p107, %p108
    %p111 = scmp.ne.s32.totalorder %s96, %s110
    %p112 = scmp.eq.s32.totalorder %s16, 0
    %p113 = por %p111, %p112
    %s115 = sadd.s32 %s114, 1
    %p118 = scmp.eq.s32.totalorder %s10, 1
    %p119 = scmp.ne.s32.totalorder %s114, %s116
    %p120 = scmp.eq.s32.totalorder %s10, 0
    %p121 = por %p119, %p120
    %p122 = scmp.ne.s32.totalorder %s114, %s116
    %p123 = scmp.eq.s32.totalorder %s15, 1
    %p124 = por %p122, %p123
    %p125 = scmp.ne.s32.totalorder %s116, %s117
    %p126 = scmp.eq.s32.totalorder %s15, 0
    %p127 = por %p125, %p126
    %p128 = scmp.ne.s32.totalorder %s116, %s117
    %p129 = scmp.eq.s32.totalorder %s16, 1
    %p130 = por %p128, %p129
    %p132 = scmp.ne.s32.totalorder %s117, %s131
    %p133 = scmp.eq.s32.totalorder %s16, 0
    %p134 = por %p132, %p133
    %p135 = scmp.le.s32.totalorder 1, %s10
    %p136 = scmp.lt.s32.totalorder %s10, 3
    %p137 = pnand %p135, %p136
    %p138 = pneg %p137
    // Predicated region
    $region9: #{bert_gru_sentiment.3} parent=5 // pred_check
      _
    $region10: #{bert_gru_sentiment.3} parent=5 // pred_check_branch
      %140 = sbr.rel (%p137) target = $region12
    $region11: #{bert_gru_sentiment.3} parent=5 // pred_region
      %s141 = ssub.s32 %s10, 1
      // Predicated region
      $region13: #{bert_gru_sentiment.3} parent=11 // pred_check
        %p142 = pneg %p85
      $region14: #{bert_gru_sentiment.3} parent=11 // pred_check_branch
        %144 = sbr.rel (%p142) target = $region16
      $region15: #{bert_gru_sentiment.3} parent=11 // pred_region
        _
      $region16: #{bert_gru_sentiment.3} parent=11 // pred_fallthru
        _
      // Predicated region
      $region17: #{bert_gru_sentiment.3} parent=11 // pred_check
        %p145 = pneg %p106
      $region18: #{bert_gru_sentiment.3} parent=11 // pred_check_branch
        %147 = sbr.rel (%p145) target = $region20
      $region19: #{bert_gru_sentiment.3} parent=11 // pred_region
        _
      $region20: #{bert_gru_sentiment.3} parent=11 // pred_fallthru
        _
    $region12: #{bert_gru_sentiment.3} parent=5 // pred_fallthru
      _
    %p148 = scmp.lt.s32.totalorder %s10, 2
    // Predicated region
    $region21: #{bert_gru_sentiment.3} parent=5 // pred_check
      %p149 = pneg %p148
    $region22: #{bert_gru_sentiment.3} parent=5 // pred_check_branch
      %151 = sbr.rel (%p149) target = $region24
    $region23: #{bert_gru_sentiment.3} parent=5 // pred_region
      // Predicated region
      $region25: #{bert_gru_sentiment.3} parent=23 // pred_check
        %p152 = pneg %p30
      $region26: #{bert_gru_sentiment.3} parent=23 // pred_check_branch
        %154 = sbr.rel (%p152) target = $region28
      $region27: #{bert_gru_sentiment.3} parent=23 // pred_region
        %s155 = smul.u32 4, %s10
        %p156 = scmp.lt.s32.totalorder %s155, 7
        %s157 = scalar_select %p156, %s155, 7
        %s158 = smul.addr %s157, 4
        %s159 = scalar_lea.vmem %s0, %s158
        %s160 = smul.u32 4, %s10
      $region28: #{bert_gru_sentiment.3} parent=23 // pred_fallthru
        _
      // Predicated region
      $region29: #{bert_gru_sentiment.3} parent=23 // pred_check
        %p161 = pneg %p58
      $region30: #{bert_gru_sentiment.3} parent=23 // pred_check_branch
        %163 = sbr.rel (%p161) target = $region32
      $region31: #{bert_gru_sentiment.3} parent=23 // pred_region
        %s164 = ssub.s32 1, %s10
        %s165 = smul.u32 4, %s164
        %p166 = scmp.lt.s32.totalorder %s165, 7
        %s167 = scalar_select %p166, %s165, 7
        %s168 = smul.addr %s167, 4
        %s169 = scalar_lea.vmem %s1, %s168
        %s170 = ssub.s32 1, %s10
        %s171 = smul.u32 4, %s170
      $region32: #{bert_gru_sentiment.3} parent=23 // pred_fallthru
        _
    $region24: #{bert_gru_sentiment.3} parent=5 // pred_fallthru
      _
    %p172 = scmp.le.s32.totalorder 1, %s10
    %p173 = scmp.lt.s32.totalorder %s10, 3
    %p174 = pnand %p172, %p173
    %p175 = pneg %p174
    // Predicated region
    $region33: #{bert_gru_sentiment.3} parent=5 // pred_check
      _
    $region34: #{bert_gru_sentiment.3} parent=5 // pred_check_branch
      %177 = sbr.rel (%p174) target = $region36
    $region35: #{bert_gru_sentiment.3} parent=5 // pred_region
      %s178 = ssub.s32 %s10, 1
      %s179 = smul.u32 4, %s15
      %p180 = scmp.lt.s32.totalorder %s179, 7
      %s181 = scalar_select %p180, %s179, 7
      %s182 = smul.addr %s181, 4
      %s183 = scalar_lea.vmem %s0, %s182
      %p184 = pneg %p36
      %p185 = pneg %p33
      %s186 = ssub.s32 1, %s15
      %s187 = smul.u32 4, %s186
      %p188 = scmp.lt.s32.totalorder %s187, 7
      %s189 = scalar_select %p188, %s187, 7
      %s190 = smul.addr %s189, 4
      %s191 = scalar_lea.vmem %s1, %s190
      %p192 = pneg %p64
      %p193 = pneg %p61
      %p194 = pneg %p85
      %p195 = pneg %p82
      %p196 = pneg %p106
      %p197 = pneg %p103
      %p198 = pneg %p127
      %p199 = pneg %p124
      %s200 = smul.u32 4, %s15
      %p201 = scmp.lt.s32.totalorder %s200, 7
      %s202 = scalar_select %p201, %s200, 7
      %s203 = smul.addr %s202, 4
      %s204 = scalar_lea.vmem %s0, %s203
      %s205 = smul.u32 4, %s15
      %s206 = ssub.s32 1, %s15
      %s207 = smul.u32 4, %s206
      %p208 = scmp.lt.s32.totalorder %s207, 7
      %s209 = scalar_select %p208, %s207, 7
      %s210 = smul.addr %s209, 4
      %s211 = scalar_lea.vmem %s1, %s210
      %s212 = ssub.s32 1, %s15
      %s213 = smul.u32 4, %s212
      %p214 = scmp.eq.s32.totalorder %s15, 0
      // Predicated region
      $region37: #{bert_gru_sentiment.3} parent=35 // pred_check
        %p215 = pneg %p214
      $region38: #{bert_gru_sentiment.3} parent=35 // pred_check_branch
        %217 = sbr.rel (%p215) target = $region40
      $region39: #{bert_gru_sentiment.3} parent=35 // pred_region
        %vm218 = vcmask 257024
        %219 = vst.msk [vmem:[#allocation2] sm:$0xf] %vm218, 0.0
      $region40: #{bert_gru_sentiment.3} parent=35 // pred_fallthru
        _
      %v220 = vld [vmem:[%s2] sm:$0xff]
      %v221 = vld [vmem:[%s2 + $0x8] sm:$0xff]
      %v222 = vld [vmem:[%s2 + $0x10] sm:$0xff]
      %v223 = vld [vmem:[%s2 + $0x18] sm:$0xff]
      %v224 = vld [vmem:[%s3] sm:$0x1]
      %v225 = vld [vmem:[#allocation2] sm:$0xf]
      %vm226 = vcmask 261120
      %v228 = vsel %vm226, %v225, 0
      %230 = vmatprep.subr.mxu0 0.0
      %231 = vmatpush1.msra.mxu0 %v220
      %232 = vmatprep.subr.mxu0 0.0
      %233 = vmatpush1.msra.mxu0 %v221
      %234 = vmatprep.subr.mxu0 0.0
      %235 = vmatpush1.msra.mxu0 %v222
      %236 = vmatprep.subr.mxu0 0.0
      %237 = vmatpush1.msra.mxu0 %v223
      %238 = vmatprep.subr.mxu0 0.0
      %239 = vmatpush1.msra.mxu0 0.0
      %240 = vmatprep.subr.mxu0 0.0
      %241 = vmatpush1.msra.mxu0 0.0
      %242 = vmatprep.subr.mxu0 0.0
      %243 = vmatpush1.msra.mxu0 0.0
      %244 = vmatprep.subr.mxu0 0.0
      %245 = vmatpush1.msra.mxu0 0.0
      %246 = vmatprep.subr.mxu0 0.0
      %247 = vmatpush1.msra.mxu0 0.0
      %248 = vmatprep.subr.mxu0 0.0
      %249 = vmatpush1.msra.mxu0 0.0
      %250 = vmatprep.subr.mxu0 0.0
      %251 = vmatpush1.msra.mxu0 0.0
      %252 = vmatprep.subr.mxu0 0.0
      %253 = vmatpush1.msra.mxu0 0.0
      %254 = vmatprep.subr.mxu0 0.0
      %255 = vmatpush1.msra.mxu0 0.0
      %256 = vmatprep.subr.mxu0 0.0
      %257 = vmatpush1.msra.mxu0 0.0
      %258 = vmatprep.subr.mxu0 0.0
      %259 = vmatpush1.msra.mxu0 0.0
      %260 = vmatprep.subr.mxu0 0.0
      %261 = vmatpush1.msra.mxu0 0.0
      %262 = vmatprep.subr.mxu0 0.0
      %263 = vmatpush1.msra.mxu0 0.0
      %264 = vmatprep.subr.mxu0 0.0
      %265 = vmatpush1.msra.mxu0 0.0
      %266 = vmatprep.subr.mxu0 0.0
      %267 = vmatpush1.msra.mxu0 0.0
      %268 = vmatprep.subr.mxu0 0.0
      %269 = vmatpush1.msra.mxu0 0.0
      %270 = vmatprep.subr.mxu0 0.0
      %271 = vmatpush1.msra.mxu0 0.0
      %272 = vmatprep.subr.mxu0 0.0
      %273 = vmatpush1.msra.mxu0 0.0
      %274 = vmatprep.subr.mxu0 0.0
      %275 = vmatpush1.msra.mxu0 0.0
      %276 = vmatprep.subr.mxu0 0.0
      %277 = vmatpush1.msra.mxu0 0.0
      %278 = vmatprep.subr.mxu0 0.0
      %279 = vmatpush1.msra.mxu0 0.0
      %280 = vmatprep.subr.mxu0 0.0
      %281 = vmatpush1.msra.mxu0 0.0
      %282 = vmatprep.subr.mxu0 0.0
      %283 = vmatpush1.msra.mxu0 0.0
      %284 = vmatprep.subr.mxu0 0.0
      %285 = vmatpush1.msra.mxu0 0.0
      %286 = vmatprep.subr.mxu0 0.0
      %287 = vmatpush1.msra.mxu0 0.0
      %288 = vmatprep.subr.mxu0 0.0
      %289 = vmatpush1.msra.mxu0 0.0
      %290 = vmatprep.subr.mxu0 0.0
      %291 = vmatpush1.msra.mxu0 0.0
      %292 = vmatprep.subr.mxu0 0.0
      %293 = vmatpush1.msra.mxu0 0.0
      %294 = vmatprep.mubr.f32.mxu0 0.0
      %295 = vmatmul.mubr.f32.gmra.mrb[0].mxu0 %v228
      %v296 = vpop.f32.mrb[0].mxu0
      %v297 = vadd.f32 0.0, %v296
      %v298 = vpop.f32.mrb[0].mxu0
      %299 = vdwg.mxu0
      %v300 = vld [vmem:[%s204] sm:$0xf]
      %s301 = scalar_lea.vmem %s211, 12
      %v302 = vld [vmem:[%s301] sm:$0xf]
      %v303 = vadd.f32 %v300, %v297
      %v304 = vxor.u32 %v303, 2147483648
      %v305 = vmul.f32 %v304, 1.442695
      %v306 = vpow.pop %v305
      %v307 = vadd.f32 %v306, 1.0
      %v308 = vrcp.pop %v307
      %v309 = vmul.f32 1.0, %v308
      %v311 = vlaneseq
      %v312 = vshrl.u32 %v311, 7
      %v313 = vsub.s32 0, %v312
      %v314 = vrot.slane %v224, %v313
      %315 = vrot.lane.b32.xlu0 %v314, 32
      %v316 = vpop.permute.xlu0 %315
      %v318 = vadd.f32 %v297, %v316
      %320 = vrot.lane.b32.xlu0 %v318, 96
      %v321 = vpop.permute.xlu0 %320
      %v323 = vmul.f32 %v309, %v321
      %325 = vrot.lane.b32.xlu0 %v323, 32
      %v326 = vpop.permute.xlu0 %325
      %v328 = vadd.f32 %v300, %v326
      %v329 = vtanh.pop %v328
      %v330 = vsub.f32 1.0, %v309
      %332 = vrot.lane.b32.xlu0 %v329, 112
      %v333 = vpop.permute.xlu0 %332
      %v335 = vmul.f32 %v330, %v333
      %336 = vrot.lane.b32.xlu0 %v225, 16
      %v337 = vpop.permute.xlu0 %336
      %v339 = vmul.f32 %v309, %v337
      %v340 = vadd.f32 %v335, %v339
      %342 = vrot.lane.b32.xlu0 %v297, 80
      %v343 = vpop.permute.xlu0 %342
      %v345 = vadd.f32 %v302, %v343
      %v346 = vxor.u32 %v345, 2147483648
      %v347 = vmul.f32 %v346, 1.442695
      %v348 = vpow.pop %v347
      %v349 = vadd.f32 %v348, 1.0
      %v350 = vrcp.pop %v349
      %v351 = vmul.f32 1.0, %v350
      %352 = vrot.lane.b32.xlu0 %v314, 64
      %v353 = vpop.permute.xlu0 %352
      %v355 = vadd.f32 %v297, %v353
      %357 = vrot.lane.b32.xlu0 %v355, 48
      %v358 = vpop.permute.xlu0 %357
      %v360 = vmul.f32 %v351, %v358
      %362 = vrot.lane.b32.xlu0 %v360, 32
      %v363 = vpop.permute.xlu0 %362
      %v365 = vadd.f32 %v302, %v363
      %v366 = vtanh.pop %v365
      %v367 = vsub.f32 1.0, %v351
      %369 = vrot.lane.b32.xlu0 %v366, 112
      %v370 = vpop.permute.xlu0 %369
      %v372 = vmul.f32 %v367, %v370
      %v373 = vmul.f32 %v351, %v225
      %v374 = vadd.f32 %v372, %v373
      %376 = vrot.lane.b32.xlu0 %v340, 112
      %v377 = vpop.permute.xlu0 %376
      %vm379 = vcmask 130048
      %v380 = vsel %vm379, %v377, %v374
      %v382 = vsel %vm226, %v380, 0
      %384 = vmatprep.subr.mxu0 0.0
      %385 = vmatpush1.msra.mxu0 %v220
      %386 = vmatprep.subr.mxu0 0.0
      %387 = vmatpush1.msra.mxu0 %v221
      %388 = vmatprep.subr.mxu0 0.0
      %389 = vmatpush1.msra.mxu0 %v222
      %390 = vmatprep.subr.mxu0 0.0
      %391 = vmatpush1.msra.mxu0 %v223
      %392 = vmatprep.subr.mxu0 0.0
      %393 = vmatpush1.msra.mxu0 0.0
      %394 = vmatprep.subr.mxu0 0.0
      %395 = vmatpush1.msra.mxu0 0.0
      %396 = vmatprep.subr.mxu0 0.0
      %397 = vmatpush1.msra.mxu0 0.0
      %398 = vmatprep.subr.mxu0 0.0
      %399 = vmatpush1.msra.mxu0 0.0
      %400 = vmatprep.subr.mxu0 0.0
      %401 = vmatpush1.msra.mxu0 0.0
      %402 = vmatprep.subr.mxu0 0.0
      %403 = vmatpush1.msra.mxu0 0.0
      %404 = vmatprep.subr.mxu0 0.0
      %405 = vmatpush1.msra.mxu0 0.0
      %406 = vmatprep.subr.mxu0 0.0
      %407 = vmatpush1.msra.mxu0 0.0
      %408 = vmatprep.subr.mxu0 0.0
      %409 = vmatpush1.msra.mxu0 0.0
      %410 = vmatprep.subr.mxu0 0.0
      %411 = vmatpush1.msra.mxu0 0.0
      %412 = vmatprep.subr.mxu0 0.0
      %413 = vmatpush1.msra.mxu0 0.0
      %414 = vmatprep.subr.mxu0 0.0
      %415 = vmatpush1.msra.mxu0 0.0
      %416 = vmatprep.subr.mxu0 0.0
      %417 = vmatpush1.msra.mxu0 0.0
      %418 = vmatprep.subr.mxu0 0.0
      %419 = vmatpush1.msra.mxu0 0.0
      %420 = vmatprep.subr.mxu0 0.0
      %421 = vmatpush1.msra.mxu0 0.0
      %422 = vmatprep.subr.mxu0 0.0
      %423 = vmatpush1.msra.mxu0 0.0
      %424 = vmatprep.subr.mxu0 0.0
      %425 = vmatpush1.msra.mxu0 0.0
      %426 = vmatprep.subr.mxu0 0.0
      %427 = vmatpush1.msra.mxu0 0.0
      %428 = vmatprep.subr.mxu0 0.0
      %429 = vmatpush1.msra.mxu0 0.0
      %430 = vmatprep.subr.mxu0 0.0
      %431 = vmatpush1.msra.mxu0 0.0
      %432 = vmatprep.subr.mxu0 0.0
      %433 = vmatpush1.msra.mxu0 0.0
      %434 = vmatprep.subr.mxu0 0.0
      %435 = vmatpush1.msra.mxu0 0.0
      %436 = vmatprep.subr.mxu0 0.0
      %437 = vmatpush1.msra.mxu0 0.0
      %438 = vmatprep.subr.mxu0 0.0
      %439 = vmatpush1.msra.mxu0 0.0
      %440 = vmatprep.subr.mxu0 0.0
      %441 = vmatpush1.msra.mxu0 0.0
      %442 = vmatprep.subr.mxu0 0.0
      %443 = vmatpush1.msra.mxu0 0.0
      %444 = vmatprep.subr.mxu0 0.0
      %445 = vmatpush1.msra.mxu0 0.0
      %446 = vmatprep.subr.mxu0 0.0
      %447 = vmatpush1.msra.mxu0 0.0
      %448 = vmatprep.mubr.f32.mxu0 0.0
      %449 = vmatmul.mubr.f32.gmra.mrb[0].mxu0 %v382
      %v450 = vpop.f32.mrb[0].mxu0
      %v451 = vadd.f32 0.0, %v450
      %v452 = vpop.f32.mrb[0].mxu0
      %453 = vdwg.mxu0
      %s454 = scalar_lea.vmem %s204, 4
      %v455 = vld [vmem:[%s454] sm:$0xf]
      %s456 = scalar_lea.vmem %s211, 8
      %v457 = vld [vmem:[%s456] sm:$0xf]
      %v458 = vadd.f32 %v455, %v451
      %v459 = vxor.u32 %v458, 2147483648
      %v460 = vmul.f32 %v459, 1.442695
      %v461 = vpow.pop %v460
      %v462 = vadd.f32 %v461, 1.0
      %v463 = vrcp.pop %v462
      %v464 = vmul.f32 1.0, %v463
      %v465 = vadd.f32 %v451, %v316
      %467 = vrot.lane.b32.xlu0 %v465, 96
      %v468 = vpop.permute.xlu0 %467
      %v470 = vmul.f32 %v464, %v468
      %472 = vrot.lane.b32.xlu0 %v470, 32
      %v473 = vpop.permute.xlu0 %472
      %v475 = vadd.f32 %v455, %v473
      %v476 = vtanh.pop %v475
      %v477 = vsub.f32 1.0, %v464
      %479 = vrot.lane.b32.xlu0 %v476, 112
      %v480 = vpop.permute.xlu0 %479
      %v482 = vmul.f32 %v477, %v480
      %v483 = vmul.f32 %v464, %v340
      %v484 = vadd.f32 %v482, %v483
      %486 = vrot.lane.b32.xlu0 %v451, 80
      %v487 = vpop.permute.xlu0 %486
      %v489 = vadd.f32 %v457, %v487
      %v490 = vxor.u32 %v489, 2147483648
      %v491 = vmul.f32 %v490, 1.442695
      %v492 = vpow.pop %v491
      %v493 = vadd.f32 %v492, 1.0
      %v494 = vrcp.pop %v493
      %v495 = vmul.f32 1.0, %v494
      %v496 = vadd.f32 %v451, %v353
      %498 = vrot.lane.b32.xlu0 %v496, 48
      %v499 = vpop.permute.xlu0 %498
      %v501 = vmul.f32 %v495, %v499
      %503 = vrot.lane.b32.xlu0 %v501, 32
      %v504 = vpop.permute.xlu0 %503
      %v506 = vadd.f32 %v457, %v504
      %v507 = vtanh.pop %v506
      %v508 = vsub.f32 1.0, %v495
      %510 = vrot.lane.b32.xlu0 %v507, 112
      %v511 = vpop.permute.xlu0 %510
      %v513 = vmul.f32 %v508, %v511
      %v514 = vmul.f32 %v495, %v374
      %v515 = vadd.f32 %v513, %v514
      %517 = vrot.lane.b32.xlu0 %v484, 112
      %v518 = vpop.permute.xlu0 %517
      %v520 = vsel %vm379, %v518, %v515
      %v522 = vsel %vm226, %v520, 0
      %524 = vmatprep.subr.mxu0 0.0
      %525 = vmatpush1.msra.mxu0 %v220
      %526 = vmatprep.subr.mxu0 0.0
      %527 = vmatpush1.msra.mxu0 %v221
      %528 = vmatprep.subr.mxu0 0.0
      %529 = vmatpush1.msra.mxu0 %v222
      %530 = vmatprep.subr.mxu0 0.0
      %531 = vmatpush1.msra.mxu0 %v223
      %532 = vmatprep.subr.mxu0 0.0
      %533 = vmatpush1.msra.mxu0 0.0
      %534 = vmatprep.subr.mxu0 0.0
      %535 = vmatpush1.msra.mxu0 0.0
      %536 = vmatprep.subr.mxu0 0.0
      %537 = vmatpush1.msra.mxu0 0.0
      %538 = vmatprep.subr.mxu0 0.0
      %539 = vmatpush1.msra.mxu0 0.0
      %540 = vmatprep.subr.mxu0 0.0
      %541 = vmatpush1.msra.mxu0 0.0
      %542 = vmatprep.subr.mxu0 0.0
      %543 = vmatpush1.msra.mxu0 0.0
      %544 = vmatprep.subr.mxu0 0.0
      %545 = vmatpush1.msra.mxu0 0.0
      %546 = vmatprep.subr.mxu0 0.0
      %547 = vmatpush1.msra.mxu0 0.0
      %548 = vmatprep.subr.mxu0 0.0
      %549 = vmatpush1.msra.mxu0 0.0
      %550 = vmatprep.subr.mxu0 0.0
      %551 = vmatpush1.msra.mxu0 0.0
      %552 = vmatprep.subr.mxu0 0.0
      %553 = vmatpush1.msra.mxu0 0.0
      %554 = vmatprep.subr.mxu0 0.0
      %555 = vmatpush1.msra.mxu0 0.0
      %556 = vmatprep.subr.mxu0 0.0
      %557 = vmatpush1.msra.mxu0 0.0
      %558 = vmatprep.subr.mxu0 0.0
      %559 = vmatpush1.msra.mxu0 0.0
      %560 = vmatprep.subr.mxu0 0.0
      %561 = vmatpush1.msra.mxu0 0.0
      %562 = vmatprep.subr.mxu0 0.0
      %563 = vmatpush1.msra.mxu0 0.0
      %564 = vmatprep.subr.mxu0 0.0
      %565 = vmatpush1.msra.mxu0 0.0
      %566 = vmatprep.subr.mxu0 0.0
      %567 = vmatpush1.msra.mxu0 0.0
      %568 = vmatprep.subr.mxu0 0.0
      %569 = vmatpush1.msra.mxu0 0.0
      %570 = vmatprep.subr.mxu0 0.0
      %571 = vmatpush1.msra.mxu0 0.0
      %572 = vmatprep.subr.mxu0 0.0
      %573 = vmatpush1.msra.mxu0 0.0
      %574 = vmatprep.subr.mxu0 0.0
      %575 = vmatpush1.msra.mxu0 0.0
      %576 = vmatprep.subr.mxu0 0.0
      %577 = vmatpush1.msra.mxu0 0.0
      %578 = vmatprep.subr.mxu0 0.0
      %579 = vmatpush1.msra.mxu0 0.0
      %580 = vmatprep.subr.mxu0 0.0
      %581 = vmatpush1.msra.mxu0 0.0
      %582 = vmatprep.subr.mxu0 0.0
      %583 = vmatpush1.msra.mxu0 0.0
      %584 = vmatprep.subr.mxu0 0.0
      %585 = vmatpush1.msra.mxu0 0.0
      %586 = vmatprep.subr.mxu0 0.0
      %587 = vmatpush1.msra.mxu0 0.0
      %588 = vmatprep.mubr.f32.mxu0 0.0
      %589 = vmatmul.mubr.f32.gmra.mrb[0].mxu0 %v522
      %v590 = vpop.f32.mrb[0].mxu0
      %v591 = vadd.f32 0.0, %v590
      %v592 = vpop.f32.mrb[0].mxu0
      %593 = vdwg.mxu0
      %s594 = scalar_lea.vmem %s204, 8
      %v595 = vld [vmem:[%s594] sm:$0xf]
      %s596 = scalar_lea.vmem %s211, 4
      %v597 = vld [vmem:[%s596] sm:$0xf]
      %v598 = vadd.f32 %v595, %v591
      %v599 = vxor.u32 %v598, 2147483648
      %v600 = vmul.f32 %v599, 1.442695
      %v601 = vpow.pop %v600
      %v602 = vadd.f32 %v601, 1.0
      %v603 = vrcp.pop %v602
      %v604 = vmul.f32 1.0, %v603
      %v605 = vadd.f32 %v591, %v316
      %607 = vrot.lane.b32.xlu0 %v605, 96
      %v608 = vpop.permute.xlu0 %607
      %v610 = vmul.f32 %v604, %v608
      %612 = vrot.lane.b32.xlu0 %v610, 32
      %v613 = vpop.permute.xlu0 %612
      %v615 = vadd.f32 %v595, %v613
      %v616 = vtanh.pop %v615
      %v617 = vsub.f32 1.0, %v604
      %619 = vrot.lane.b32.xlu0 %v616, 112
      %v620 = vpop.permute.xlu0 %619
      %v622 = vmul.f32 %v617, %v620
      %v623 = vmul.f32 %v604, %v484
      %v624 = vadd.f32 %v622, %v623
      %626 = vrot.lane.b32.xlu0 %v591, 80
      %v627 = vpop.permute.xlu0 %626
      %v629 = vadd.f32 %v597, %v627
      %v630 = vxor.u32 %v629, 2147483648
      %v631 = vmul.f32 %v630, 1.442695
      %v632 = vpow.pop %v631
      %v633 = vadd.f32 %v632, 1.0
      %v634 = vrcp.pop %v633
      %v635 = vmul.f32 1.0, %v634
      %v636 = vadd.f32 %v591, %v353
      %638 = vrot.lane.b32.xlu0 %v636, 48
      %v639 = vpop.permute.xlu0 %638
      %v641 = vmul.f32 %v635, %v639
      %643 = vrot.lane.b32.xlu0 %v641, 32
      %v644 = vpop.permute.xlu0 %643
      %v646 = vadd.f32 %v597, %v644
      %v647 = vtanh.pop %v646
      %v648 = vsub.f32 1.0, %v635
      %650 = vrot.lane.b32.xlu0 %v647, 112
      %v651 = vpop.permute.xlu0 %650
      %v653 = vmul.f32 %v648, %v651
      %v654 = vmul.f32 %v635, %v515
      %v655 = vadd.f32 %v653, %v654
      %657 = vrot.lane.b32.xlu0 %v624, 112
      %v658 = vpop.permute.xlu0 %657
      %v660 = vsel %vm379, %v658, %v655
      %v662 = vsel %vm226, %v660, 0
      %664 = vmatprep.subr.mxu0 0.0
      %665 = vmatpush1.msra.mxu0 %v220
      %666 = vmatprep.subr.mxu0 0.0
      %667 = vmatpush1.msra.mxu0 %v221
      %668 = vmatprep.subr.mxu0 0.0
      %669 = vmatpush1.msra.mxu0 %v222
      %670 = vmatprep.subr.mxu0 0.0
      %671 = vmatpush1.msra.mxu0 %v223
      %672 = vmatprep.subr.mxu0 0.0
      %673 = vmatpush1.msra.mxu0 0.0
      %674 = vmatprep.subr.mxu0 0.0
      %675 = vmatpush1.msra.mxu0 0.0
      %676 = vmatprep.subr.mxu0 0.0
      %677 = vmatpush1.msra.mxu0 0.0
      %678 = vmatprep.subr.mxu0 0.0
      %679 = vmatpush1.msra.mxu0 0.0
      %680 = vmatprep.subr.mxu0 0.0
      %681 = vmatpush1.msra.mxu0 0.0
      %682 = vmatprep.subr.mxu0 0.0
      %683 = vmatpush1.msra.mxu0 0.0
      %684 = vmatprep.subr.mxu0 0.0
      %685 = vmatpush1.msra.mxu0 0.0
      %686 = vmatprep.subr.mxu0 0.0
      %687 = vmatpush1.msra.mxu0 0.0
      %688 = vmatprep.subr.mxu0 0.0
      %689 = vmatpush1.msra.mxu0 0.0
      %690 = vmatprep.subr.mxu0 0.0
      %691 = vmatpush1.msra.mxu0 0.0
      %692 = vmatprep.subr.mxu0 0.0
      %693 = vmatpush1.msra.mxu0 0.0
      %694 = vmatprep.subr.mxu0 0.0
      %695 = vmatpush1.msra.mxu0 0.0
      %696 = vmatprep.subr.mxu0 0.0
      %697 = vmatpush1.msra.mxu0 0.0
      %698 = vmatprep.subr.mxu0 0.0
      %699 = vmatpush1.msra.mxu0 0.0
      %700 = vmatprep.subr.mxu0 0.0
      %701 = vmatpush1.msra.mxu0 0.0
      %702 = vmatprep.subr.mxu0 0.0
      %703 = vmatpush1.msra.mxu0 0.0
      %704 = vmatprep.subr.mxu0 0.0
      %705 = vmatpush1.msra.mxu0 0.0
      %706 = vmatprep.subr.mxu0 0.0
      %707 = vmatpush1.msra.mxu0 0.0
      %708 = vmatprep.subr.mxu0 0.0
      %709 = vmatpush1.msra.mxu0 0.0
      %710 = vmatprep.subr.mxu0 0.0
      %711 = vmatpush1.msra.mxu0 0.0
      %712 = vmatprep.subr.mxu0 0.0
      %713 = vmatpush1.msra.mxu0 0.0
      %714 = vmatprep.subr.mxu0 0.0
      %715 = vmatpush1.msra.mxu0 0.0
      %716 = vmatprep.subr.mxu0 0.0
      %717 = vmatpush1.msra.mxu0 0.0
      %718 = vmatprep.subr.mxu0 0.0
      %719 = vmatpush1.msra.mxu0 0.0
      %720 = vmatprep.subr.mxu0 0.0
      %721 = vmatpush1.msra.mxu0 0.0
      %722 = vmatprep.subr.mxu0 0.0
      %723 = vmatpush1.msra.mxu0 0.0
      %724 = vmatprep.subr.mxu0 0.0
      %725 = vmatpush1.msra.mxu0 0.0
      %726 = vmatprep.subr.mxu0 0.0
      %727 = vmatpush1.msra.mxu0 0.0
      %728 = vmatprep.mubr.f32.mxu0 0.0
      %729 = vmatmul.mubr.f32.gmra.mrb[0].mxu0 %v662
      %v730 = vpop.f32.mrb[0].mxu0
      %v731 = vadd.f32 0.0, %v730
      %v732 = vpop.f32.mrb[0].mxu0
      %733 = vdwg.mxu0
      %s734 = scalar_lea.vmem %s204, 12
      %v735 = vld [vmem:[%s734] sm:$0xf]
      %v736 = vld [vmem:[%s211] sm:$0xf]
      %v737 = vadd.f32 %v735, %v731
      %v738 = vxor.u32 %v737, 2147483648
      %v739 = vmul.f32 %v738, 1.442695
      %v740 = vpow.pop %v739
      %v741 = vadd.f32 %v740, 1.0
      %v742 = vrcp.pop %v741
      %v743 = vmul.f32 1.0, %v742
      %v744 = vadd.f32 %v731, %v316
      %746 = vrot.lane.b32.xlu0 %v744, 96
      %v747 = vpop.permute.xlu0 %746
      %v749 = vmul.f32 %v743, %v747
      %751 = vrot.lane.b32.xlu0 %v749, 32
      %v752 = vpop.permute.xlu0 %751
      %v754 = vadd.f32 %v735, %v752
      %v755 = vtanh.pop %v754
      %v756 = vsub.f32 1.0, %v743
      %758 = vrot.lane.b32.xlu0 %v755, 112
      %v759 = vpop.permute.xlu0 %758
      %v761 = vmul.f32 %v756, %v759
      %v762 = vmul.f32 %v743, %v624
      %v763 = vadd.f32 %v761, %v762
      %765 = vrot.lane.b32.xlu0 %v731, 80
      %v766 = vpop.permute.xlu0 %765
      %v768 = vadd.f32 %v736, %v766
      %v769 = vxor.u32 %v768, 2147483648
      %v770 = vmul.f32 %v769, 1.442695
      %v771 = vpow.pop %v770
      %v772 = vadd.f32 %v771, 1.0
      %v773 = vrcp.pop %v772
      %v774 = vmul.f32 1.0, %v773
      %v775 = vadd.f32 %v731, %v353
      %777 = vrot.lane.b32.xlu0 %v775, 48
      %v778 = vpop.permute.xlu0 %777
      %v780 = vmul.f32 %v774, %v778
      %782 = vrot.lane.b32.xlu0 %v780, 32
      %v783 = vpop.permute.xlu0 %782
      %v785 = vadd.f32 %v736, %v783
      %v786 = vtanh.pop %v785
      %v787 = vsub.f32 1.0, %v774
      %789 = vrot.lane.b32.xlu0 %v786, 112
      %v790 = vpop.permute.xlu0 %789
      %v792 = vmul.f32 %v787, %v790
      %v793 = vmul.f32 %v774, %v655
      %v794 = vadd.f32 %v792, %v793
      %796 = vrot.lane.b32.xlu0 %v763, 112
      %v797 = vpop.permute.xlu0 %796
      %v799 = vsel %vm379, %v797, %v794
      %vm800 = vcmask 257024
      %801 = vst.msk [vmem:[#allocation2] sm:$0xf] %vm800, %v799
      %p802 = scmp.eq.s32.totalorder %s15, 1
      // Predicated region
      $region41: #{bert_gru_sentiment.3} parent=35 // pred_check
        %p803 = pneg %p802
      $region42: #{bert_gru_sentiment.3} parent=35 // pred_check_branch
        %805 = sbr.rel (%p803) target = $region44
      $region43: #{bert_gru_sentiment.3} parent=35 // pred_region
        %vm806 = vcmask 125952
        %807 = vst.msk [vmem:[%s4] sm:$0xf] %vm806, %v797
        %809 = vrot.lane.b32.xlu0 %v794, 112
        %v810 = vpop.permute.xlu0 %809
        %s812 = scalar_lea.vmem %s4, 4
        %813 = vst.msk [vmem:[%s812] sm:$0xf] %vm806, %v810
      $region44: #{bert_gru_sentiment.3} parent=35 // pred_fallthru
        _
      // Predicated region
      $region45: #{bert_gru_sentiment.3} parent=35 // pred_check
        %p814 = pneg %p124
      $region46: #{bert_gru_sentiment.3} parent=35 // pred_check_branch
        %816 = sbr.rel (%p814) target = $region48
      $region47: #{bert_gru_sentiment.3} parent=35 // pred_region
        _
      $region48: #{bert_gru_sentiment.3} parent=35 // pred_fallthru
        _
      // Predicated region
      $region49: #{bert_gru_sentiment.3} parent=35 // pred_check
        %p817 = pneg %p124
      $region50: #{bert_gru_sentiment.3} parent=35 // pred_check_branch
        %819 = sbr.rel (%p817) target = $region52
      $region51: #{bert_gru_sentiment.3} parent=35 // pred_region
        _
      $region52: #{bert_gru_sentiment.3} parent=35 // pred_fallthru
        _
    $region36: #{bert_gru_sentiment.3} parent=5 // pred_fallthru
      _
    %p820 = scmp.le.s32.totalorder 2, %s10
    // Predicated region
    $region53: #{bert_gru_sentiment.3} parent=5 // pred_check
      %p821 = pneg %p820
    $region54: #{bert_gru_sentiment.3} parent=5 // pred_check_branch
      %823 = sbr.rel (%p821) target = $region56
    $region55: #{bert_gru_sentiment.3} parent=5 // pred_region
      %s824 = ssub.s32 %s10, 2
    $region56: #{bert_gru_sentiment.3} parent=5 // pred_fallthru
      _
  $region6: #{bert_gru_sentiment.3} parent=0 // loop_footer
    %s14 = sadd.s32 1, %s10
  $region7: #{bert_gru_sentiment.3} parent=0 // loop_footer_branch
    %9 = sbr.rel target = $region3
  $region8: #{bert_gru_sentiment.3} parent=0 // loop_exit
    _

</llo_original>
